<compile_context>
chip_gen: v7x
topology: tpu7x:2x2x1
jax: 0.10.0
libtpu: 0.0.40
codegen_flags: <defaults>
</compile_context>

<pallas_src>
import functools

import jax
import jax.numpy as jnp
from jax.experimental import pallas as pl
from jax.experimental.pallas import tpu as pltpu

EPS = 1e-5  # nn.BatchNorm2d default eps


# ---------------------------------------------------------------------------
# Kernel 1: conv3x3 (+ optional fused BN+ReLU on the input) + bias + stats
# ---------------------------------------------------------------------------
def _conv3x3_kernel(x_ref, w_ref, b_ref, s_ref, t_ref, o_ref, stat_ref,
                    *, Nb, H, fuse_bn_relu):
    # x_ref   : (Nb, H, W*Cin)      input block (raw bf16 conv1 output when
    #                               fuse_bn_relu=True, f32 network input else)
    # w_ref   : (3*W*Cin, W*Cout)   bf16 banded slab, kh folded into K
    # b_ref   : (1, W*Cout)         conv bias tiled across W (f32)
    # s_ref/t_ref : (1, W*Cin)      previous layer's BN scale/shift (tiled)
    # o_ref   : (Nb, H, W*Cout)     raw conv output (pre-BN), bf16
    # stat_ref: (1, 8, W*Cout)      rows 0/1 = per-step sum / sum-of-squares
    WCin = x_ref.shape[-1]
    WCout = o_ref.shape[-1]
    zero_row = jnp.zeros((1, WCin), jnp.float32)

    # Build the K-folded LHS in registers (no padding scratch, no zero stores).
    lhs_parts = []
    for n in range(Nb):
        x = x_ref[n].astype(jnp.float32)                     # (H, W*Cin)
        if fuse_bn_relu:
            x = jnp.maximum(x * s_ref[...] + t_ref[...], 0.0)
        top = jnp.concatenate([zero_row, x[:H - 1]], axis=0)  # row h -> x[h-1]
        bot = jnp.concatenate([x[1:], zero_row], axis=0)      # row h -> x[h+1]
        lhs_parts.append(jnp.concatenate([top, x, bot], axis=-1))
    lhs = lhs_parts[0] if Nb == 1 else jnp.concatenate(lhs_parts, axis=0)
    lhs = lhs.astype(jnp.bfloat16)                            # (Nb*H, 3*W*Cin)

    # Single MXU contraction per grid step; f32 accumulation.
    y = jnp.dot(lhs, w_ref[...], preferred_element_type=jnp.float32)
    y = y + b_ref[...]                                        # (Nb*H, W*Cout)

    for n in range(Nb):
        o_ref[n] = y[n * H:(n + 1) * H].astype(o_ref.dtype)

    # Per-step statistics packed into one sublane-padded (8, W*Cout) store.
    stats = jnp.concatenate(
        [jnp.sum(y, axis=0, keepdims=True),
         jnp.sum(y * y, axis=0, keepdims=True),
         jnp.zeros((6, WCout), jnp.float32)], axis=0)
    stat_ref[0] = stats


def conv3x3_with_stats(x, w_slab, bias_row, scale_row, shift_row,
                       *, Nb, fuse_bn_relu):
    N, H, WCin = x.shape
    WCout = w_slab.shape[-1]
    steps = N // Nb
    kernel = functools.partial(_conv3x3_kernel, Nb=Nb, H=H,
                               fuse_bn_relu=fuse_bn_relu)
    y, stats = pl.pallas_call(
        kernel,
        out_shape=(
            jax.ShapeDtypeStruct((N, H, WCout), jnp.bfloat16),
            jax.ShapeDtypeStruct((steps, 8, WCout), jnp.float32),
        ),
        grid_spec=pltpu.PrefetchScalarGridSpec(
            num_scalar_prefetch=0,
            grid=(steps,),
            in_specs=[
                pl.BlockSpec((Nb, H, WCin), lambda i: (i, 0, 0)),
                pl.BlockSpec(w_slab.shape, lambda i: (0, 0)),
                pl.BlockSpec((1, WCout), lambda i: (0, 0)),
                pl.BlockSpec((1, WCin), lambda i: (0, 0)),
                pl.BlockSpec((1, WCin), lambda i: (0, 0)),
            ],
            out_specs=[
                pl.BlockSpec((Nb, H, WCout), lambda i: (i, 0, 0)),
                pl.BlockSpec((1, 8, WCout), lambda i: (i, 0, 0)),
            ],
        ),
        # Per-step stat outputs (no accumulation / no persistent scratch) keep
        # the batch axis megacore-safe.
        compiler_params=pltpu.CompilerParams(
            dimension_semantics=("parallel",),
            vmem_limit_bytes=64 * 1024 * 1024),
    )(x, w_slab, bias_row, scale_row, shift_row)
    return y, stats


# ---------------------------------------------------------------------------
# Kernel 2: BN affine + ReLU + 2x2/stride-2 max pool (fused epilogue)
# ---------------------------------------------------------------------------
def _bn_relu_pool_kernel(x_ref, s_ref, t_ref, csel_ref, fm_ref, pool_ref, *, H):
    # x_ref    : (1, H, W*C)   raw conv2 output (bf16)
    # s/t_ref  : (1, W*C)      BN2 scale/shift tiled across W
    # csel_ref : (2, W*C, (W/2)*C)  bf16 0/1 even/odd column-block selectors
    # fm_ref   : (1, H, W*C)   BN2+ReLU feature map (f32, lane-dense store)
    # pool_ref : (1, H/2, (W/2)*C)  2x2 max pool (f32)
    Ho = H // 2
    fm = jnp.maximum(x_ref[0].astype(jnp.float32) * s_ref[...] + t_ref[...],
                     0.0)                                     # (H, W*C)
    fm_ref[0] = fm

    # Row pairs: VPU max over static row slices (no rsel matmuls, no extra DMA).
    even = jnp.concatenate([fm[2 * i:2 * i + 1] for i in range(Ho)], axis=0)
    odd = jnp.concatenate([fm[2 * i + 1:2 * i + 2] for i in range(Ho)], axis=0)
    v = jnp.maximum(even, odd).astype(jnp.bfloat16)           # (Ho, W*C)

    # Column pairs: exact 0/1 bf16 selection matmuls on the otherwise idle MXU.
    c_even = jnp.dot(v, csel_ref[0], preferred_element_type=jnp.float32)
    c_odd = jnp.dot(v, csel_ref[1], preferred_element_type=jnp.float32)
    pool_ref[0] = jnp.maximum(c_even, c_odd)                  # (Ho, W/2*C)


def bn_relu_pool(y, scale_row, shift_row, csel):
    N, H, WC = y.shape
    Ho = H // 2
    WoC = csel.shape[-1]
    kernel = functools.partial(_bn_relu_pool_kernel, H=H)
    fm, pooled = pl.pallas_call(
        kernel,
        out_shape=(
            jax.ShapeDtypeStruct((N, H, WC), jnp.float32),
            jax.ShapeDtypeStruct((N, Ho, WoC), jnp.float32),
        ),
        grid_spec=pltpu.PrefetchScalarGridSpec(
            num_scalar_prefetch=0,
            grid=(N,),
            in_specs=[
                pl.BlockSpec((1, H, WC), lambda n: (n, 0, 0)),
                pl.BlockSpec((1, WC), lambda n: (0, 0)),
                pl.BlockSpec((1, WC), lambda n: (0, 0)),
                pl.BlockSpec((2, WC, WoC), lambda n: (0, 0, 0)),
            ],
            out_specs=[
                pl.BlockSpec((1, H, WC), lambda n: (n, 0, 0)),
                pl.BlockSpec((1, Ho, WoC), lambda n: (n, 0, 0)),
            ],
        ),
        compiler_params=pltpu.CompilerParams(
            dimension_semantics=("parallel",),
            vmem_limit_bytes=64 * 1024 * 1024),
    )(y, scale_row, shift_row, csel)
    return fm, pooled


# ---------------------------------------------------------------------------
# One-time parameter preparation (outside the per-call trace)
# ---------------------------------------------------------------------------
def _make_weight_slab(w_oihw, W):
    """torch (Cout, Cin, 3, 3) -> (3*W*Cin, W*Cout) bf16 banded slab.

    Row block kh, row (w_in*Cin + ci), col (w_out*Cout + co) holds
    w_oihw[co, ci, kh, kw] with w_in = w_out + kw - 1; out-of-range taps are
    absent, implementing Conv2d(padding=1)'s horizontal zero padding.
    """
    wt = jnp.transpose(w_oihw, (2, 3, 1, 0)).astype(jnp.float32)  # (3,3,Ci,Co)
    blocks = []
    for kh in range(3):
        s = 0.0
        for kw in range(3):
            band = jnp.eye(W, k=1 - kw, dtype=jnp.float32)        # (W, W)
            s = s + jnp.kron(band, wt[kh, kw])                    # (WCi, WCo)
        blocks.append(s)
    return jnp.concatenate(blocks, axis=0).astype(jnp.bfloat16)


def _make_col_selectors(W, C):
    """bf16 0/1 matrices selecting even/odd W-blocks of channels."""
    Wo = W // 2
    cols = (2 * jnp.arange(Wo)[:, None] * C
            + jnp.arange(C)[None, :]).reshape(-1)                 # (Wo*C,)
    even = jax.nn.one_hot(cols, W * C, dtype=jnp.float32).T
    odd = jax.nn.one_hot(cols + C, W * C, dtype=jnp.float32).T
    return jnp.stack([even, odd]).astype(jnp.bfloat16)            # (2, WC, WoC)


def prepare_down_params(params, H, W):
    """Fold torch weights into kernel-ready slabs once (not per forward call)."""
    Cin = params["w1"].shape[1]
    Cout = params["w1"].shape[0]
    del H  # whole-image blocks; H-tiling with a 2-row halo would go here.
    return dict(
        w1=_make_weight_slab(params["w1"], W),
        w2=_make_weight_slab(params["w2"], W),
        b1=jnp.tile(params["b1"], W).astype(jnp.float32)[None, :],
        b2=jnp.tile(params["b2"], W).astype(jnp.float32)[None, :],
        g1=params["g1"], be1=params["be1"],
        g2=params["g2"], be2=params["be2"],
        csel=_make_col_selectors(W, Cout),
        ones1=jnp.ones((1, W * Cin), jnp.float32),
        zeros1=jnp.zeros((1, W * Cin), jnp.float32),
    )


# ---------------------------------------------------------------------------
# Glue (tiny O(C) reductions, runs under jit)
# ---------------------------------------------------------------------------
def _bn_affine_rows(stats, gamma, beta, W, count):
    """Fold training-mode BN (batch stats, biased var) into tiled scale/shift."""
    C = gamma.shape[0]
    s = stats[:, 0, :].sum(axis=0).reshape(W, C).sum(axis=0)
    q = stats[:, 1, :].sum(axis=0).reshape(W, C).sum(axis=0)
    mean = s / count
    # TODO(synk): E[x^2]-E[x]^2 in f32 is cancellation-prone at scale; switch
    # to shifted/two-pass statistics if accuracy beyond demo shapes matters.
    var = jnp.maximum(q / count - mean * mean, 0.0)
    scale = gamma / jnp.sqrt(var + EPS)
    shift = beta - mean * scale
    return jnp.tile(scale, W)[None, :], jnp.tile(shift, W)[None, :]


def _pick_batch_tile(N, H):
    """Largest divisor of N with Nb*H <= ~256, keeping >= 2 grid steps (v7x)."""
    target = max(1, 256 // H)
    if N >= 2:
        target = min(target, N // 2)
    nb = 1
    for cand in range(1, target + 1):
        if N % cand == 0:
            nb = cand
    return nb


def down_forward(x_nchw, prep):
    """Equivalent of `down.forward`: returns (maxpooled, feature_map), NCHW."""
    N, Cin, H, W = x_nchw.shape
    Cout = prep["g1"].shape[0]
    count = N * H * W
    Nb = _pick_batch_tile(N, H)

    # NCHW -> (N, H, W*C) channels-minor lane-flattened layout.
    x = jnp.transpose(x_nchw, (0, 2, 3, 1)).reshape(N, H, W * Cin)

    # --- conv1 + bias (+ per-step BN stats) ---
    y1, st1 = conv3x3_with_stats(x, prep["w1"], prep["b1"],
                                 prep["ones1"], prep["zeros1"],
                                 Nb=Nb, fuse_bn_relu=False)
    a1, t1 = _bn_affine_rows(st1, prep["g1"], prep["be1"], W, count)

    # --- conv2 + bias, BN1+ReLU fused into its input path ---
    y2, st2 = conv3x3_with_stats(y1, prep["w2"], prep["b2"], a1, t1,
                                 Nb=Nb, fuse_bn_relu=True)
    a2, t2 = _bn_affine_rows(st2, prep["g2"], prep["be2"], W, count)

    # --- BN2 + ReLU + 2x2/2 max pool (fused epilogue) ---
    fm_flat, pool_flat = bn_relu_pool(y2, a2, t2, prep["csel"])

    fm = jnp.transpose(fm_flat.reshape(N, H, W, Cout), (0, 3, 1, 2))
    pooled = jnp.transpose(pool_flat.reshape(N, H // 2, W // 2, Cout),
                           (0, 3, 1, 2))
    return pooled, fm


# ---------------------------------------------------------------------------
# Pure-JAX reference (matches PyTorch forward in training mode)
# ---------------------------------------------------------------------------
def ref_down(x_nchw, p):
    def conv(x, w, b):
        y = jax.lax.conv_general_dilated(
            x, w, window_strides=(1, 1), padding=((1, 1), (1, 1)),
            dimension_numbers=("NCHW", "OIHW", "NCHW"),
            precision=jax.lax.Precision.HIGHEST)
        return y + b[None, :, None, None]

    def bnr(y, g, be):
        mean = y.mean(axis=(0, 2, 3), keepdims=True)
        var = ((y - mean) ** 2).mean(axis=(0, 2, 3), keepdims=True)
        yn = (y - mean) / jnp.sqrt(var + EPS)
        return jnp.maximum(yn * g[None, :, None, None]
                           + be[None, :, None, None], 0.0)

    h = bnr(conv(x_nchw, p["w1"], p["b1"]), p["g1"], p["be1"])
    fm = bnr(conv(h, p["w2"], p["b2"]), p["g2"], p["be2"])
    N, C, H, W = fm.shape
    pooled = fm.reshape(N, C, H // 2, 2, W // 2, 2).max(axis=(3, 5))
    return pooled, fm


if __name__ == "__main__":
    N, Cin, Cout, H, W = 2, 4, 8, 16, 16
    ks = jax.random.split(jax.random.PRNGKey(0), 9)
    x = jax.random.normal(ks[0], (N, Cin, H, W), jnp.float32)
    params = dict(
        w1=0.2 * jax.random.normal(ks[1], (Cout, Cin, 3, 3), jnp.float32),
        b1=0.1 * jax.random.normal(ks[2], (Cout,), jnp.float32),
        g1=1.0 + 0.1 * jax.random.normal(ks[3], (Cout,), jnp.float32),
        be1=0.1 * jax.random.normal(ks[4], (Cout,), jnp.float32),
        w2=0.2 * jax.random.normal(ks[5], (Cout, Cout, 3, 3), jnp.float32),
        b2=0.1 * jax.random.normal(ks[6], (Cout,), jnp.float32),
        g2=1.0 + 0.1 * jax.random.normal(ks[7], (Cout,), jnp.float32),
        be2=0.1 * jax.random.normal(ks[8], (Cout,), jnp.float32),
    )

    prep = prepare_down_params(params, H, W)   # one-time weight/selector prep
    fwd = jax.jit(down_forward)
    pooled, fm = fwd(x, prep)
    jax.block_until_ready((pooled, fm))

    assert pooled.shape == (N, Cout, H // 2, W // 2)
    assert fm.shape == (N, Cout, H, W)

    pooled_ref, fm_ref = ref_down(x, params)
    # Tolerance accounts for bf16 MXU inputs and bf16 intermediate activations.
    assert jnp.allclose(fm, fm_ref, atol=5e-2, rtol=5e-2)
    assert jnp.allclose(pooled, pooled_ref, atol=5e-2, rtol=5e-2)

    print("KERNEL_OK")
</pallas_src>

<mosaic_0001>
module attributes {stable_mosaic.version = 11 : i64} {
  func.func @_conv3x3_kernel(%arg0: i32, %arg1: memref<1x16x64xf32, #tpu.memory_space<vmem>>, %arg2: memref<192x128xbf16, #tpu.memory_space<vmem>>, %arg3: memref<1x128xf32, #tpu.memory_space<vmem>>, %arg4: memref<1x64xf32, #tpu.memory_space<vmem>>, %arg5: memref<1x64xf32, #tpu.memory_space<vmem>>, %arg6: memref<1x16x128xbf16, #tpu.memory_space<vmem>>, %arg7: memref<1x8x128xf32, #tpu.memory_space<vmem>>) attributes {dimension_semantics = [#tpu.dimension_semantics<parallel>], iteration_bounds = array<i64: 2>, scalar_prefetch = 0 : i64, scratch_operands = 0 : i64, tpu.core_type = #tpu.core_type<tc>, window_params = [{transform_indices = @transform_0, window_bounds = array<i64: 1, 16, 64>}, {pipeline_mode = #tpu.pipeline_mode<synchronous>, transform_indices = @transform_1, window_bounds = array<i64: 192, 128>}, {pipeline_mode = #tpu.pipeline_mode<synchronous>, transform_indices = @transform_2, window_bounds = array<i64: 1, 128>}, {pipeline_mode = #tpu.pipeline_mode<synchronous>, transform_indices = @transform_3, window_bounds = array<i64: 1, 64>}, {pipeline_mode = #tpu.pipeline_mode<synchronous>, transform_indices = @transform_4, window_bounds = array<i64: 1, 64>}, {transform_indices = @transform_5, window_bounds = array<i64: 1, 16, 128>}, {transform_indices = @transform_6, window_bounds = array<i64: 1, 8, 128>}]} {
    %cst = arith.constant 0.000000e+00 : f32
    %0 = vector.broadcast %cst : f32 to vector<1x64xf32>
    %c0 = arith.constant 0 : index
    %c0_0 = arith.constant 0 : index
    %c0_1 = arith.constant 0 : index
    %1 = vector.load %arg1[%c0, %c0_0, %c0_1] : memref<1x16x64xf32, #tpu.memory_space<vmem>>, vector<1x16x64xf32>
    %2 = vector.shape_cast %1 : vector<1x16x64xf32> to vector<16x64xf32>
    %3 = vector.extract_strided_slice %2 {offsets = [0, 0], sizes = [15, 64], strides = [1, 1]} : vector<16x64xf32> to vector<15x64xf32>
    %4 = tpu.concatenate %0, %3 in 0 : vector<1x64xf32>, vector<15x64xf32> -> vector<16x64xf32>
    %5 = vector.extract_strided_slice %2 {offsets = [1, 0], sizes = [15, 64], strides = [1, 1]} : vector<16x64xf32> to vector<15x64xf32>
    %6 = tpu.concatenate %5, %0 in 0 : vector<15x64xf32>, vector<1x64xf32> -> vector<16x64xf32>
    %7 = tpu.concatenate %4, %2, %6 in 1 : vector<16x64xf32>, vector<16x64xf32>, vector<16x64xf32> -> vector<16x192xf32>
    %8 = arith.truncf %7 : vector<16x192xf32> to vector<16x192xbf16>
    %c0_2 = arith.constant 0 : index
    %c0_3 = arith.constant 0 : index
    %9 = vector.load %arg2[%c0_2, %c0_3] : memref<192x128xbf16, #tpu.memory_space<vmem>>, vector<192x128xbf16>
    %cst_4 = arith.constant dense<0.000000e+00> : vector<16x128xf32>
    %10 = tpu.matmul %8, %9, %cst_4 {dimension_numbers = #tpu.dot_dimension_numbers<[1], [0], [0], [1], [0, 0, 1, 1], [], []>} : vector<16x192xbf16>, vector<192x128xbf16>, vector<16x128xf32> -> vector<16x128xf32>
    %c0_5 = arith.constant 0 : index
    %c0_6 = arith.constant 0 : index
    %11 = vector.load %arg3[%c0_5, %c0_6] : memref<1x128xf32, #tpu.memory_space<vmem>>, vector<1x128xf32>
    %12 = vector.broadcast %11 : vector<1x128xf32> to vector<16x128xf32>
    %13 = arith.addf %10, %12 : vector<16x128xf32>
    %14 = arith.truncf %13 : vector<16x128xf32> to vector<16x128xbf16>
    %c0_7 = arith.constant 0 : index
    %c0_8 = arith.constant 0 : index
    %c0_9 = arith.constant 0 : index
    %15 = vector.load %arg6[%c0_7, %c0_8, %c0_9] : memref<1x16x128xbf16, #tpu.memory_space<vmem>>, vector<1x16x128xbf16>
    %16 = vector.shape_cast %15 : vector<1x16x128xbf16> to vector<16x128xbf16>
    %17 = vector.shape_cast %14 : vector<16x128xbf16> to vector<1x16x128xbf16>
    tpu.vector_store %arg6[%c0_7, %c0_8, %c0_9], %17 {strides = array<i32>} : memref<1x16x128xbf16, #tpu.memory_space<vmem>>, vector<1x16x128xbf16>,
    %cst_10 = arith.constant dense<0.000000e+00> : vector<128xf32>
    %18 = vector.multi_reduction <add>, %13, %cst_10 [0] : vector<16x128xf32> to vector<128xf32>
    %19 = vector.shape_cast %18 : vector<128xf32> to vector<1x128xf32>
    %20 = arith.mulf %13, %13 : vector<16x128xf32>
    %cst_11 = arith.constant dense<0.000000e+00> : vector<128xf32>
    %21 = vector.multi_reduction <add>, %20, %cst_11 [0] : vector<16x128xf32> to vector<128xf32>
    %22 = vector.shape_cast %21 : vector<128xf32> to vector<1x128xf32>
    %cst_12 = arith.constant 0.000000e+00 : f32
    %23 = vector.broadcast %cst_12 : f32 to vector<6x128xf32>
    %24 = tpu.concatenate %19, %22, %23 in 0 : vector<1x128xf32>, vector<1x128xf32>, vector<6x128xf32> -> vector<8x128xf32>
    %c0_13 = arith.constant 0 : index
    %c0_14 = arith.constant 0 : index
    %c0_15 = arith.constant 0 : index
    %25 = vector.load %arg7[%c0_13, %c0_14, %c0_15] : memref<1x8x128xf32, #tpu.memory_space<vmem>>, vector<1x8x128xf32>
    %26 = vector.shape_cast %25 : vector<1x8x128xf32> to vector<8x128xf32>
    %27 = vector.shape_cast %24 : vector<8x128xf32> to vector<1x8x128xf32>
    tpu.vector_store %arg7[%c0_13, %c0_14, %c0_15], %27 {strides = array<i32>} : memref<1x8x128xf32, #tpu.memory_space<vmem>>, vector<1x8x128xf32>,
    return
  }
  func.func @transform_0(%arg0: i32) -> (i32, i32, i32) {
    %c0_i32 = arith.constant 0 : i32
    %c0_i32_0 = arith.constant 0 : i32
    %c0_i32_1 = arith.constant 0 : i32
    return %arg0, %c0_i32, %c0_i32_0 : i32, i32, i32
  }
  func.func @transform_1(%arg0: i32) -> (i32, i32) {
    %c0_i32 = arith.constant 0 : i32
    %c0_i32_0 = arith.constant 0 : i32
    %c0_i32_1 = arith.constant 0 : i32
    return %c0_i32, %c0_i32_0 : i32, i32
  }
  func.func @transform_2(%arg0: i32) -> (i32, i32) {
    %c0_i32 = arith.constant 0 : i32
    %c0_i32_0 = arith.constant 0 : i32
    %c0_i32_1 = arith.constant 0 : i32
    return %c0_i32, %c0_i32_0 : i32, i32
  }
  func.func @transform_3(%arg0: i32) -> (i32, i32) {
    %c0_i32 = arith.constant 0 : i32
    %c0_i32_0 = arith.constant 0 : i32
    %c0_i32_1 = arith.constant 0 : i32
    return %c0_i32, %c0_i32_0 : i32, i32
  }
  func.func @transform_4(%arg0: i32) -> (i32, i32) {
    %c0_i32 = arith.constant 0 : i32
    %c0_i32_0 = arith.constant 0 : i32
    %c0_i32_1 = arith.constant 0 : i32
    return %c0_i32, %c0_i32_0 : i32, i32
  }
  func.func @transform_5(%arg0: i32) -> (i32, i32, i32) {
    %c0_i32 = arith.constant 0 : i32
    %c0_i32_0 = arith.constant 0 : i32
    %c0_i32_1 = arith.constant 0 : i32
    return %arg0, %c0_i32, %c0_i32_0 : i32, i32, i32
  }
  func.func @transform_6(%arg0: i32) -> (i32, i32, i32) {
    %c0_i32 = arith.constant 0 : i32
    %c0_i32_0 = arith.constant 0 : i32
    %c0_i32_1 = arith.constant 0 : i32
    return %arg0, %c0_i32, %c0_i32_0 : i32, i32, i32
  }
}

module attributes {stable_mosaic.version = 11 : i64} {
  func.func @_conv3x3_kernel(%arg0: i32, %arg1: memref<1x16x128xbf16, #tpu.memory_space<vmem>>, %arg2: memref<384x128xbf16, #tpu.memory_space<vmem>>, %arg3: memref<1x128xf32, #tpu.memory_space<vmem>>, %arg4: memref<1x128xf32, #tpu.memory_space<vmem>>, %arg5: memref<1x128xf32, #tpu.memory_space<vmem>>, %arg6: memref<1x16x128xbf16, #tpu.memory_space<vmem>>, %arg7: memref<1x8x128xf32, #tpu.memory_space<vmem>>) attributes {dimension_semantics = [#tpu.dimension_semantics<parallel>], iteration_bounds = array<i64: 2>, scalar_prefetch = 0 : i64, scratch_operands = 0 : i64, tpu.core_type = #tpu.core_type<tc>, window_params = [{transform_indices = @transform_0, window_bounds = array<i64: 1, 16, 128>}, {pipeline_mode = #tpu.pipeline_mode<synchronous>, transform_indices = @transform_1, window_bounds = array<i64: 384, 128>}, {pipeline_mode = #tpu.pipeline_mode<synchronous>, transform_indices = @transform_2, window_bounds = array<i64: 1, 128>}, {pipeline_mode = #tpu.pipeline_mode<synchronous>, transform_indices = @transform_3, window_bounds = array<i64: 1, 128>}, {pipeline_mode = #tpu.pipeline_mode<synchronous>, transform_indices = @transform_4, window_bounds = array<i64: 1, 128>}, {transform_indices = @transform_5, window_bounds = array<i64: 1, 16, 128>}, {transform_indices = @transform_6, window_bounds = array<i64: 1, 8, 128>}]} {
    %cst = arith.constant 0.000000e+00 : f32
    %0 = vector.broadcast %cst : f32 to vector<1x128xf32>
    %c0 = arith.constant 0 : index
    %c0_0 = arith.constant 0 : index
    %c0_1 = arith.constant 0 : index
    %1 = vector.load %arg1[%c0, %c0_0, %c0_1] : memref<1x16x128xbf16, #tpu.memory_space<vmem>>, vector<1x16x128xbf16>
    %2 = vector.shape_cast %1 : vector<1x16x128xbf16> to vector<16x128xbf16>
    %3 = arith.extf %2 : vector<16x128xbf16> to vector<16x128xf32>
    %c0_2 = arith.constant 0 : index
    %c0_3 = arith.constant 0 : index
    %4 = vector.load %arg4[%c0_2, %c0_3] : memref<1x128xf32, #tpu.memory_space<vmem>>, vector<1x128xf32>
    %5 = vector.broadcast %4 : vector<1x128xf32> to vector<16x128xf32>
    %6 = arith.mulf %3, %5 : vector<16x128xf32>
    %c0_4 = arith.constant 0 : index
    %c0_5 = arith.constant 0 : index
    %7 = vector.load %arg5[%c0_4, %c0_5] : memref<1x128xf32, #tpu.memory_space<vmem>>, vector<1x128xf32>
    %8 = vector.broadcast %7 : vector<1x128xf32> to vector<16x128xf32>
    %9 = arith.addf %6, %8 : vector<16x128xf32>
    %cst_6 = arith.constant 0.000000e+00 : f32
    %10 = vector.broadcast %cst_6 : f32 to vector<16x128xf32>
    %11 = arith.maximumf %9, %10 : vector<16x128xf32>
    %12 = vector.extract_strided_slice %11 {offsets = [0, 0], sizes = [15, 128], strides = [1, 1]} : vector<16x128xf32> to vector<15x128xf32>
    %13 = tpu.concatenate %0, %12 in 0 : vector<1x128xf32>, vector<15x128xf32> -> vector<16x128xf32>
    %14 = vector.extract_strided_slice %11 {offsets = [1, 0], sizes = [15, 128], strides = [1, 1]} : vector<16x128xf32> to vector<15x128xf32>
    %15 = tpu.concatenate %14, %0 in 0 : vector<15x128xf32>, vector<1x128xf32> -> vector<16x128xf32>
    %16 = tpu.concatenate %13, %11, %15 in 1 : vector<16x128xf32>, vector<16x128xf32>, vector<16x128xf32> -> vector<16x384xf32>
    %17 = arith.truncf %16 : vector<16x384xf32> to vector<16x384xbf16>
    %c0_7 = arith.constant 0 : index
    %c0_8 = arith.constant 0 : index
    %18 = vector.load %arg2[%c0_7, %c0_8] : memref<384x128xbf16, #tpu.memory_space<vmem>>, vector<384x128xbf16>
    %cst_9 = arith.constant dense<0.000000e+00> : vector<16x128xf32>
    %19 = tpu.matmul %17, %18, %cst_9 {dimension_numbers = #tpu.dot_dimension_numbers<[1], [0], [0], [1], [0, 0, 1, 1], [], []>} : vector<16x384xbf16>, vector<384x128xbf16>, vector<16x128xf32> -> vector<16x128xf32>
    %c0_10 = arith.constant 0 : index
    %c0_11 = arith.constant 0 : index
    %20 = vector.load %arg3[%c0_10, %c0_11] : memref<1x128xf32, #tpu.memory_space<vmem>>, vector<1x128xf32>
    %21 = vector.broadcast %20 : vector<1x128xf32> to vector<16x128xf32>
    %22 = arith.addf %19, %21 : vector<16x128xf32>
    %23 = arith.truncf %22 : vector<16x128xf32> to vector<16x128xbf16>
    %c0_12 = arith.constant 0 : index
    %c0_13 = arith.constant 0 : index
    %c0_14 = arith.constant 0 : index
    %24 = vector.load %arg6[%c0_12, %c0_13, %c0_14] : memref<1x16x128xbf16, #tpu.memory_space<vmem>>, vector<1x16x128xbf16>
    %25 = vector.shape_cast %24 : vector<1x16x128xbf16> to vector<16x128xbf16>
    %26 = vector.shape_cast %23 : vector<16x128xbf16> to vector<1x16x128xbf16>
    tpu.vector_store %arg6[%c0_12, %c0_13, %c0_14], %26 {strides = array<i32>} : memref<1x16x128xbf16, #tpu.memory_space<vmem>>, vector<1x16x128xbf16>,
    %cst_15 = arith.constant dense<0.000000e+00> : vector<128xf32>
    %27 = vector.multi_reduction <add>, %22, %cst_15 [0] : vector<16x128xf32> to vector<128xf32>
    %28 = vector.shape_cast %27 : vector<128xf32> to vector<1x128xf32>
    %29 = arith.mulf %22, %22 : vector<16x128xf32>
    %cst_16 = arith.constant dense<0.000000e+00> : vector<128xf32>
    %30 = vector.multi_reduction <add>, %29, %cst_16 [0] : vector<16x128xf32> to vector<128xf32>
    %31 = vector.shape_cast %30 : vector<128xf32> to vector<1x128xf32>
    %cst_17 = arith.constant 0.000000e+00 : f32
    %32 = vector.broadcast %cst_17 : f32 to vector<6x128xf32>
    %33 = tpu.concatenate %28, %31, %32 in 0 : vector<1x128xf32>, vector<1x128xf32>, vector<6x128xf32> -> vector<8x128xf32>
    %c0_18 = arith.constant 0 : index
    %c0_19 = arith.constant 0 : index
    %c0_20 = arith.constant 0 : index
    %34 = vector.load %arg7[%c0_18, %c0_19, %c0_20] : memref<1x8x128xf32, #tpu.memory_space<vmem>>, vector<1x8x128xf32>
    %35 = vector.shape_cast %34 : vector<1x8x128xf32> to vector<8x128xf32>
    %36 = vector.shape_cast %33 : vector<8x128xf32> to vector<1x8x128xf32>
    tpu.vector_store %arg7[%c0_18, %c0_19, %c0_20], %36 {strides = array<i32>} : memref<1x8x128xf32, #tpu.memory_space<vmem>>, vector<1x8x128xf32>,
    return
  }
  func.func @transform_0(%arg0: i32) -> (i32, i32, i32) {
    %c0_i32 = arith.constant 0 : i32
    %c0_i32_0 = arith.constant 0 : i32
    %c0_i32_1 = arith.constant 0 : i32
    return %arg0, %c0_i32, %c0_i32_0 : i32, i32, i32
  }
  func.func @transform_1(%arg0: i32) -> (i32, i32) {
    %c0_i32 = arith.constant 0 : i32
    %c0_i32_0 = arith.constant 0 : i32
    %c0_i32_1 = arith.constant 0 : i32
    return %c0_i32, %c0_i32_0 : i32, i32
  }
  func.func @transform_2(%arg0: i32) -> (i32, i32) {
    %c0_i32 = arith.constant 0 : i32
    %c0_i32_0 = arith.constant 0 : i32
    %c0_i32_1 = arith.constant 0 : i32
    return %c0_i32, %c0_i32_0 : i32, i32
  }
  func.func @transform_3(%arg0: i32) -> (i32, i32) {
    %c0_i32 = arith.constant 0 : i32
    %c0_i32_0 = arith.constant 0 : i32
    %c0_i32_1 = arith.constant 0 : i32
    return %c0_i32, %c0_i32_0 : i32, i32
  }
  func.func @transform_4(%arg0: i32) -> (i32, i32) {
    %c0_i32 = arith.constant 0 : i32
    %c0_i32_0 = arith.constant 0 : i32
    %c0_i32_1 = arith.constant 0 : i32
    return %c0_i32, %c0_i32_0 : i32, i32
  }
  func.func @transform_5(%arg0: i32) -> (i32, i32, i32) {
    %c0_i32 = arith.constant 0 : i32
    %c0_i32_0 = arith.constant 0 : i32
    %c0_i32_1 = arith.constant 0 : i32
    return %arg0, %c0_i32, %c0_i32_0 : i32, i32, i32
  }
  func.func @transform_6(%arg0: i32) -> (i32, i32, i32) {
    %c0_i32 = arith.constant 0 : i32
    %c0_i32_0 = arith.constant 0 : i32
    %c0_i32_1 = arith.constant 0 : i32
    return %arg0, %c0_i32, %c0_i32_0 : i32, i32, i32
  }
}

module attributes {stable_mosaic.version = 11 : i64} {
  func.func @_bn_relu_pool_kernel(%arg0: i32, %arg1: memref<1x16x128xbf16, #tpu.memory_space<vmem>>, %arg2: memref<1x128xf32, #tpu.memory_space<vmem>>, %arg3: memref<1x128xf32, #tpu.memory_space<vmem>>, %arg4: memref<2x128x64xbf16, #tpu.memory_space<vmem>>, %arg5: memref<1x16x128xf32, #tpu.memory_space<vmem>>, %arg6: memref<1x8x64xf32, #tpu.memory_space<vmem>>) attributes {dimension_semantics = [#tpu.dimension_semantics<parallel>], iteration_bounds = array<i64: 2>, scalar_prefetch = 0 : i64, scratch_operands = 0 : i64, tpu.core_type = #tpu.core_type<tc>, window_params = [{transform_indices = @transform_0, window_bounds = array<i64: 1, 16, 128>}, {pipeline_mode = #tpu.pipeline_mode<synchronous>, transform_indices = @transform_1, window_bounds = array<i64: 1, 128>}, {pipeline_mode = #tpu.pipeline_mode<synchronous>, transform_indices = @transform_2, window_bounds = array<i64: 1, 128>}, {pipeline_mode = #tpu.pipeline_mode<synchronous>, transform_indices = @transform_3, window_bounds = array<i64: 2, 128, 64>}, {transform_indices = @transform_4, window_bounds = array<i64: 1, 16, 128>}, {transform_indices = @transform_5, window_bounds = array<i64: 1, 8, 64>}]} {
    %c0 = arith.constant 0 : index
    %c0_0 = arith.constant 0 : index
    %c0_1 = arith.constant 0 : index
    %0 = vector.load %arg1[%c0, %c0_0, %c0_1] : memref<1x16x128xbf16, #tpu.memory_space<vmem>>, vector<1x16x128xbf16>
    %1 = vector.shape_cast %0 : vector<1x16x128xbf16> to vector<16x128xbf16>
    %2 = arith.extf %1 : vector<16x128xbf16> to vector<16x128xf32>
    %c0_2 = arith.constant 0 : index
    %c0_3 = arith.constant 0 : index
    %3 = vector.load %arg2[%c0_2, %c0_3] : memref<1x128xf32, #tpu.memory_space<vmem>>, vector<1x128xf32>
    %4 = vector.broadcast %3 : vector<1x128xf32> to vector<16x128xf32>
    %5 = arith.mulf %2, %4 : vector<16x128xf32>
    %c0_4 = arith.constant 0 : index
    %c0_5 = arith.constant 0 : index
    %6 = vector.load %arg3[%c0_4, %c0_5] : memref<1x128xf32, #tpu.memory_space<vmem>>, vector<1x128xf32>
    %7 = vector.broadcast %6 : vector<1x128xf32> to vector<16x128xf32>
    %8 = arith.addf %5, %7 : vector<16x128xf32>
    %cst = arith.constant 0.000000e+00 : f32
    %9 = vector.broadcast %cst : f32 to vector<16x128xf32>
    %10 = arith.maximumf %8, %9 : vector<16x128xf32>
    %c0_6 = arith.constant 0 : index
    %c0_7 = arith.constant 0 : index
    %c0_8 = arith.constant 0 : index
    %11 = vector.load %arg5[%c0_6, %c0_7, %c0_8] : memref<1x16x128xf32, #tpu.memory_space<vmem>>, vector<1x16x128xf32>
    %12 = vector.shape_cast %11 : vector<1x16x128xf32> to vector<16x128xf32>
    %13 = vector.shape_cast %10 : vector<16x128xf32> to vector<1x16x128xf32>
    tpu.vector_store %arg5[%c0_6, %c0_7, %c0_8], %13 {strides = array<i32>} : memref<1x16x128xf32, #tpu.memory_space<vmem>>, vector<1x16x128xf32>,
    %14 = vector.extract_strided_slice %10 {offsets = [0, 0], sizes = [1, 128], strides = [1, 1]} : vector<16x128xf32> to vector<1x128xf32>
    %15 = vector.extract_strided_slice %10 {offsets = [2, 0], sizes = [1, 128], strides = [1, 1]} : vector<16x128xf32> to vector<1x128xf32>
    %16 = vector.extract_strided_slice %10 {offsets = [4, 0], sizes = [1, 128], strides = [1, 1]} : vector<16x128xf32> to vector<1x128xf32>
    %17 = vector.extract_strided_slice %10 {offsets = [6, 0], sizes = [1, 128], strides = [1, 1]} : vector<16x128xf32> to vector<1x128xf32>
    %18 = vector.extract_strided_slice %10 {offsets = [8, 0], sizes = [1, 128], strides = [1, 1]} : vector<16x128xf32> to vector<1x128xf32>
    %19 = vector.extract_strided_slice %10 {offsets = [10, 0], sizes = [1, 128], strides = [1, 1]} : vector<16x128xf32> to vector<1x128xf32>
    %20 = vector.extract_strided_slice %10 {offsets = [12, 0], sizes = [1, 128], strides = [1, 1]} : vector<16x128xf32> to vector<1x128xf32>
    %21 = vector.extract_strided_slice %10 {offsets = [14, 0], sizes = [1, 128], strides = [1, 1]} : vector<16x128xf32> to vector<1x128xf32>
    %22 = tpu.concatenate %14, %15, %16, %17, %18, %19, %20, %21 in 0 : vector<1x128xf32>, vector<1x128xf32>, vector<1x128xf32>, vector<1x128xf32>, vector<1x128xf32>, vector<1x128xf32>, vector<1x128xf32>, vector<1x128xf32> -> vector<8x128xf32>
    %23 = vector.extract_strided_slice %10 {offsets = [1, 0], sizes = [1, 128], strides = [1, 1]} : vector<16x128xf32> to vector<1x128xf32>
    %24 = vector.extract_strided_slice %10 {offsets = [3, 0], sizes = [1, 128], strides = [1, 1]} : vector<16x128xf32> to vector<1x128xf32>
    %25 = vector.extract_strided_slice %10 {offsets = [5, 0], sizes = [1, 128], strides = [1, 1]} : vector<16x128xf32> to vector<1x128xf32>
    %26 = vector.extract_strided_slice %10 {offsets = [7, 0], sizes = [1, 128], strides = [1, 1]} : vector<16x128xf32> to vector<1x128xf32>
    %27 = vector.extract_strided_slice %10 {offsets = [9, 0], sizes = [1, 128], strides = [1, 1]} : vector<16x128xf32> to vector<1x128xf32>
    %28 = vector.extract_strided_slice %10 {offsets = [11, 0], sizes = [1, 128], strides = [1, 1]} : vector<16x128xf32> to vector<1x128xf32>
    %29 = vector.extract_strided_slice %10 {offsets = [13, 0], sizes = [1, 128], strides = [1, 1]} : vector<16x128xf32> to vector<1x128xf32>
    %30 = vector.extract_strided_slice %10 {offsets = [15, 0], sizes = [1, 128], strides = [1, 1]} : vector<16x128xf32> to vector<1x128xf32>
    %31 = tpu.concatenate %23, %24, %25, %26, %27, %28, %29, %30 in 0 : vector<1x128xf32>, vector<1x128xf32>, vector<1x128xf32>, vector<1x128xf32>, vector<1x128xf32>, vector<1x128xf32>, vector<1x128xf32>, vector<1x128xf32> -> vector<8x128xf32>
    %32 = arith.maximumf %22, %31 : vector<8x128xf32>
    %33 = arith.truncf %32 : vector<8x128xf32> to vector<8x128xbf16>
    %c0_9 = arith.constant 0 : index
    %c0_10 = arith.constant 0 : index
    %c0_11 = arith.constant 0 : index
    %34 = vector.load %arg4[%c0_9, %c0_10, %c0_11] : memref<2x128x64xbf16, #tpu.memory_space<vmem>>, vector<1x128x64xbf16>
    %35 = vector.shape_cast %34 : vector<1x128x64xbf16> to vector<128x64xbf16>
    %cst_12 = arith.constant dense<0.000000e+00> : vector<8x64xf32>
    %36 = tpu.matmul %33, %35, %cst_12 {dimension_numbers = #tpu.dot_dimension_numbers<[1], [0], [0], [1], [0, 0, 1, 1], [], []>} : vector<8x128xbf16>, vector<128x64xbf16>, vector<8x64xf32> -> vector<8x64xf32>
    %c1 = arith.constant 1 : index
    %c0_13 = arith.constant 0 : index
    %c0_14 = arith.constant 0 : index
    %37 = vector.load %arg4[%c1, %c0_13, %c0_14] : memref<2x128x64xbf16, #tpu.memory_space<vmem>>, vector<1x128x64xbf16>
    %38 = vector.shape_cast %37 : vector<1x128x64xbf16> to vector<128x64xbf16>
    %cst_15 = arith.constant dense<0.000000e+00> : vector<8x64xf32>
    %39 = tpu.matmul %33, %38, %cst_15 {dimension_numbers = #tpu.dot_dimension_numbers<[1], [0], [0], [1], [0, 0, 1, 1], [], []>} : vector<8x128xbf16>, vector<128x64xbf16>, vector<8x64xf32> -> vector<8x64xf32>
    %40 = arith.maximumf %36, %39 : vector<8x64xf32>
    %c0_16 = arith.constant 0 : index
    %c0_17 = arith.constant 0 : index
    %c0_18 = arith.constant 0 : index
    %41 = vector.load %arg6[%c0_16, %c0_17, %c0_18] : memref<1x8x64xf32, #tpu.memory_space<vmem>>, vector<1x8x64xf32>
    %42 = vector.shape_cast %41 : vector<1x8x64xf32> to vector<8x64xf32>
    %43 = vector.shape_cast %40 : vector<8x64xf32> to vector<1x8x64xf32>
    tpu.vector_store %arg6[%c0_16, %c0_17, %c0_18], %43 {strides = array<i32>} : memref<1x8x64xf32, #tpu.memory_space<vmem>>, vector<1x8x64xf32>,
    return
  }
  func.func @transform_0(%arg0: i32) -> (i32, i32, i32) {
    %c0_i32 = arith.constant 0 : i32
    %c0_i32_0 = arith.constant 0 : i32
    %c0_i32_1 = arith.constant 0 : i32
    return %arg0, %c0_i32, %c0_i32_0 : i32, i32, i32
  }
  func.func @transform_1(%arg0: i32) -> (i32, i32) {
    %c0_i32 = arith.constant 0 : i32
    %c0_i32_0 = arith.constant 0 : i32
    %c0_i32_1 = arith.constant 0 : i32
    return %c0_i32, %c0_i32_0 : i32, i32
  }
  func.func @transform_2(%arg0: i32) -> (i32, i32) {
    %c0_i32 = arith.constant 0 : i32
    %c0_i32_0 = arith.constant 0 : i32
    %c0_i32_1 = arith.constant 0 : i32
    return %c0_i32, %c0_i32_0 : i32, i32
  }
  func.func @transform_3(%arg0: i32) -> (i32, i32, i32) {
    %c0_i32 = arith.constant 0 : i32
    %c0_i32_0 = arith.constant 0 : i32
    %c0_i32_1 = arith.constant 0 : i32
    %c0_i32_2 = arith.constant 0 : i32
    return %c0_i32, %c0_i32_0, %c0_i32_1 : i32, i32, i32
  }
  func.func @transform_4(%arg0: i32) -> (i32, i32, i32) {
    %c0_i32 = arith.constant 0 : i32
    %c0_i32_0 = arith.constant 0 : i32
    %c0_i32_1 = arith.constant 0 : i32
    return %arg0, %c0_i32, %c0_i32_0 : i32, i32, i32
  }
  func.func @transform_5(%arg0: i32) -> (i32, i32, i32) {
    %c0_i32 = arith.constant 0 : i32
    %c0_i32_0 = arith.constant 0 : i32
    %c0_i32_1 = arith.constant 0 : i32
    return %arg0, %c0_i32, %c0_i32_0 : i32, i32, i32
  }
}

</mosaic_0001>

<llo_original>
// kernel: tile.23
$region0: #{tile.23}
  #allocation0 [shape = 's32[1]{0}', space=sflag, size = 0x4, scoped, tag = 'scoped memory for tile.23']
  %s0 = inlined_call_operand.vmem [shape: f32[8], index: 0, kind: input, shape index: {}]
  %s1 = inlined_call_operand.vmem [shape: f32[16,8], index: 1, kind: output, shape index: {}]
  // Predicated region
  $region2: #{tile.23} parent=0 // pred_check
    _
  $region3: #{tile.23} parent=0 // pred_check_branch
    %3 = sbr.rel (0) target = $region5
  $region4: #{tile.23} parent=0 // pred_region
    _
  $region5: #{tile.23} parent=0 // pred_fallthru
    _
  %v4 = vld [vmem:[%s0] ss:$0 sm:$0xff]
  %5 = vst [vmem:[%s1] sm:$0xff] %v4
  %s6 = scalar_lea.vmem %s1, 8
  %7 = vst [vmem:[%s6] sm:$0xff] %v4

// kernel: tile.24
$region0: #{tile.24}
  %s0 = inlined_call_operand.vmem [shape: f32[16,8], index: 0, kind: input, shape index: {}]
  %s1 = inlined_call_operand.hbm [shape: f32[1,128], index: 1, kind: output, shape index: {}]
  $region1: #{tile.24} parent=0
    #allocation0 [shape = 'u8[512]{0}', space=vmem, size = 0x400, scoped, tag = 'operand span for operand 1']
    #allocation1 [shape = 's32[1]{0}', space=sflag, size = 0x4, scoped, tag = 'scoped memory for tile.24']
    #allocation2 [shape = 'u8[4096]{0}', space=vmem, size = 0x1000, scoped, tag = 'scoped mem for output reshape']
    %2 = vsyncpa [#allocation1], 0
    %v3 = vld [vmem:[%s0] sm:$0x1]
    %vm4 = vcmask 64512
    %5 = vst.msk [vmem:[#allocation2] sm:$0x1] %vm4, %v3
    %s6 = scalar_lea.vmem %s0, 15
    %v7 = vld [vmem:[%s6] sm:$0x1]
    %8 = vrot.lane.b32.xlu0 %v7, 120
    %v9 = vpop.permute.xlu0 %8
    %vm10 = vcmask 1048512
    %11 = vst.msk [vmem:[#allocation2] sm:$0x1] %vm10, %v9
    %s12 = scalar_lea.vmem %s0, 14
    %v13 = vld [vmem:[%s12] sm:$0x1]
    %14 = vrot.lane.b32.xlu0 %v13, 112
    %v15 = vpop.permute.xlu0 %14
    %vm16 = vcmask 982912
    %17 = vst.msk [vmem:[#allocation2] sm:$0x1] %vm16, %v15
    %s18 = scalar_lea.vmem %s0, 13
    %v19 = vld [vmem:[%s18] sm:$0x1]
    %20 = vrot.lane.b32.xlu0 %v19, 104
    %v21 = vpop.permute.xlu0 %20
    %vm22 = vcmask 917312
    %23 = vst.msk [vmem:[#allocation2] sm:$0x1] %vm22, %v21
    %s24 = scalar_lea.vmem %s0, 12
    %v25 = vld [vmem:[%s24] sm:$0x1]
    %26 = vrot.lane.b32.xlu0 %v25, 96
    %v27 = vpop.permute.xlu0 %26
    %vm28 = vcmask 851712
    %29 = vst.msk [vmem:[#allocation2] sm:$0x1] %vm28, %v27
    %s30 = scalar_lea.vmem %s0, 11
    %v31 = vld [vmem:[%s30] sm:$0x1]
    %32 = vrot.lane.b32.xlu0 %v31, 88
    %v33 = vpop.permute.xlu0 %32
    %vm34 = vcmask 786112
    %35 = vst.msk [vmem:[#allocation2] sm:$0x1] %vm34, %v33
    %s36 = scalar_lea.vmem %s0, 10
    %v37 = vld [vmem:[%s36] sm:$0x1]
    %38 = vrot.lane.b32.xlu0 %v37, 80
    %v39 = vpop.permute.xlu0 %38
    %vm40 = vcmask 720512
    %41 = vst.msk [vmem:[#allocation2] sm:$0x1] %vm40, %v39
    %s42 = scalar_lea.vmem %s0, 9
    %v43 = vld [vmem:[%s42] sm:$0x1]
    %44 = vrot.lane.b32.xlu0 %v43, 72
    %v45 = vpop.permute.xlu0 %44
    %vm46 = vcmask 654912
    %47 = vst.msk [vmem:[#allocation2] sm:$0x1] %vm46, %v45
    %s48 = scalar_lea.vmem %s0, 8
    %v49 = vld [vmem:[%s48] sm:$0x1]
    %50 = vrot.lane.b32.xlu0 %v49, 64
    %v51 = vpop.permute.xlu0 %50
    %vm52 = vcmask 589312
    %53 = vst.msk [vmem:[#allocation2] sm:$0x1] %vm52, %v51
    %s54 = scalar_lea.vmem %s0, 7
    %v55 = vld [vmem:[%s54] sm:$0x1]
    %56 = vrot.lane.b32.xlu0 %v55, 56
    %v57 = vpop.permute.xlu0 %56
    %vm58 = vcmask 523712
    %59 = vst.msk [vmem:[#allocation2] sm:$0x1] %vm58, %v57
    %s60 = scalar_lea.vmem %s0, 6
    %v61 = vld [vmem:[%s60] sm:$0x1]
    %62 = vrot.lane.b32.xlu0 %v61, 48
    %v63 = vpop.permute.xlu0 %62
    %vm64 = vcmask 458112
    %65 = vst.msk [vmem:[#allocation2] sm:$0x1] %vm64, %v63
    %s66 = scalar_lea.vmem %s0, 5
    %v67 = vld [vmem:[%s66] sm:$0x1]
    %68 = vrot.lane.b32.xlu0 %v67, 40
    %v69 = vpop.permute.xlu0 %68
    %vm70 = vcmask 392512
    %71 = vst.msk [vmem:[#allocation2] sm:$0x1] %vm70, %v69
    %s72 = scalar_lea.vmem %s0, 4
    %v73 = vld [vmem:[%s72] sm:$0x1]
    %74 = vrot.lane.b32.xlu0 %v73, 32
    %v75 = vpop.permute.xlu0 %74
    %vm76 = vcmask 326912
    %77 = vst.msk [vmem:[#allocation2] sm:$0x1] %vm76, %v75
    %s78 = scalar_lea.vmem %s0, 3
    %v79 = vld [vmem:[%s78] sm:$0x1]
    %80 = vrot.lane.b32.xlu0 %v79, 24
    %v81 = vpop.permute.xlu0 %80
    %vm82 = vcmask 261312
    %83 = vst.msk [vmem:[#allocation2] sm:$0x1] %vm82, %v81
    %s84 = scalar_lea.vmem %s0, 2
    %v85 = vld [vmem:[%s84] sm:$0x1]
    %86 = vrot.lane.b32.xlu0 %v85, 16
    %v87 = vpop.permute.xlu0 %86
    %vm88 = vcmask 195712
    %89 = vst.msk [vmem:[#allocation2] sm:$0x1] %vm88, %v87
    %s90 = scalar_lea.vmem %s0, 1
    %v91 = vld [vmem:[%s90] sm:$0x1]
    %92 = vrot.lane.b32.xlu0 %v91, 8
    %v93 = vpop.permute.xlu0 %92
    %vm94 = vcmask 130112
    %95 = vst.msk [vmem:[#allocation2] sm:$0x1] %vm94, %v93
    %s97 = sshllo.u32 0, 1
    %v99 = vld [vmem:[#allocation2] sm:%s97]
    %s100 = sshllo.u32 0, 1
    %101 = vst [vmem:[#allocation0] sm:%s100] %v99
    %s103 = ssub.s32 16, 16
    %104 = vsyncadd [#allocation1], %s103
    %s106 = sshll.u32 [#allocation0], 4
    %s107 = int_to_ptr.vmem [resolvable:$true] %s106
    %109 = dma.vmem_to_hbm [thread:$0]  %s107, 16, %s1, [#allocation1]
    %110 = dma.done [#allocation1], 16
    %111 = vsyncpa [#allocation1], 1

// kernel: down_forward.3
$region0: #{down_forward.3}
  #allocation0 [shape = 'u32[]', space=smem, size = 0x4, offset = 0x4, fixed_abs, tag = 'smem constant byte address 0x4 - core index']
  #allocation1 [shape = 'u32[144,128]{1,0:T(1,128)}', space=vmem, size = 0x12000, scoped, tag = 'internal scratch']
  %s0 = inlined_call_operand.hbm [shape: f32[2,16,64], index: 0, kind: input, shape index: {}]
  %s1 = inlined_call_operand.hbm [shape: bf16[192,128], index: 1, kind: input, shape index: {}]
  %s2 = inlined_call_operand.hbm [shape: f32[1,128], index: 2, kind: input, shape index: {}]
  %s3 = inlined_call_operand.hbm [shape: f32[1,64], index: 3, kind: input, shape index: {}]
  %s4 = inlined_call_operand.hbm [shape: f32[1,64], index: 4, kind: input, shape index: {}]
  %s5 = inlined_call_operand.hbm [shape: bf16[2,16,128], index: 5, kind: output, shape index: {0}]
  %s6 = inlined_call_operand.hbm [shape: f32[2,8,128], index: 6, kind: output, shape index: {1}]
  %7 = xla_tuple %s5, %s6
  %s8 = sld [smem:[#allocation0]]
  $region81: #{down_forward.3} parent=0
    _
  %s10 = ssub.s32 1, %s8
  %s11 = scalar_select 0, %s10, %s8
  $region1: #{down_forward.3} parent=0
    #allocation2 [shape = 'u8[16384]{0}', space=vmem, size = 0x4000, scoped, tag = 'input window, operand 0']
    #allocation3 [shape = 's32[2]{0}', space=sflag, size = 0x8, scoped, tag = 'scoped memory for down_forward.3']
    #allocation4 [shape = 's32[2]{0}', space=sflag, size = 0x8, scoped, tag = 'scoped memory for down_forward.3']
    #allocation5 [shape = 'u8[49152]{0}', space=vmem, size = 0xc000, scoped, tag = 'input window, operand 1, single buffered']
    #allocation6 [shape = 's32[1]{0}', space=sflag, size = 0x4, scoped, tag = 'scoped memory for down_forward.3']
    #allocation7 [shape = 'u8[512]{0}', space=vmem, size = 0x400, scoped, tag = 'input window, operand 2, single buffered']
    #allocation8 [shape = 'u8[512]{0}', space=vmem, size = 0x400, scoped, tag = 'input window, operand 3, single buffered']
    #allocation9 [shape = 's32[1]{0}', space=sflag, size = 0x4, scoped, tag = 'scoped memory for down_forward.3']
    #allocation10 [shape = 'u8[512]{0}', space=vmem, size = 0x400, scoped, tag = 'input window, operand 4, single buffered']
    #allocation11 [shape = 'u8[8192]{0}', space=vmem, size = 0x2000, scoped, tag = 'output window, operand 0']
    #allocation12 [shape = 'u8[8192]{0}', space=vmem, size = 0x2000, scoped, tag = 'output window, operand 1']
    #allocation13 [shape = 's32[2]{0}', space=sflag, size = 0x8, scoped, tag = 'scoped memory for down_forward.3']
    %12 = vsyncpa [#allocation3], 0
    %s13 = scalar_lea.sflag [#allocation3], 1
    %14 = vsyncpa %s13, 0
    %15 = vsyncpa [#allocation6], 0
    %16 = vsyncpa [#allocation9], 0
    %17 = vsyncpa [#allocation4], 0
    %s18 = scalar_lea.sflag [#allocation4], 1
    %19 = vsyncpa %s18, 0
    %20 = vsyncpa [#allocation13], 0
    %s21 = scalar_lea.sflag [#allocation13], 1
    %22 = vsyncpa %s21, 0
    loop: start=0, step=1, limit=4
    $region2: #{down_forward.3} parent=1 // loop_pre_header
      _
    $region3: #{down_forward.3} parent=1 // loop_header
      %s24 = sphi 0, %s28
      %p25 = scmp.ge.s32.totalorder %s24, 4
      %s34 = sphi 0, %s36
      %s37 = sphi 0, %s34
      %s38 = sphi 0, %s37
      %s54 = sphi 0, %s38
      %s58 = sphi 0, %s58
      %s60 = sphi 0, %s58
      %s61 = sphi 0, %s60
      %s75 = sphi 0, %s61
      %s79 = sphi 0, %s79
      %s81 = sphi 0, %s79
      %s82 = sphi 0, %s81
      %s96 = sphi 0, %s82
      %s100 = sphi 0, %s100
      %s102 = sphi 0, %s100
      %s103 = sphi 0, %s102
      %s117 = sphi 0, %s103
      %s121 = sphi 0, %s121
      %s123 = sphi 0, %s121
      %s124 = sphi 0, %s123
      %s138 = sphi 0, %s124
      %s144 = sphi 0, %s146
      %s147 = sphi 0, %s144
      %s148 = sphi 0, %s147
      %s164 = sphi 0, %s148
      %s170 = sphi 0, %s172
      %s173 = sphi 0, %s170
      %s174 = sphi 0, %s173
      %s190 = sphi 0, %s174
    $region4: #{down_forward.3} parent=1 // loop_header_branch
      %27 = sbr.rel (%p25) target = $region8
    $region5: #{down_forward.3} parent=1 // loop_body
      %s29 = ssub.s32 %s24, 1
      %s30 = ssub.s32 %s24, 2
      %s31 = sadd.s32 %s24, 1
      %s32 = ssub.s32 %s24, %s31
      %p33 = scmp.eq.s32.totalorder %s32, 0
      %s35 = sadd.s32 %s34, 1
      %s36 = scalar_select %p33, %s34, %s35
      %p39 = pneg %p33
      %p40 = scmp.eq.s32.totalorder %s24, 1
      %p41 = por %p39, %p40
      %p42 = scmp.ne.s32.totalorder %s34, %s37
      %p43 = scmp.eq.s32.totalorder %s24, 0
      %p44 = por %p42, %p43
      %p45 = scmp.ne.s32.totalorder %s34, %s37
      %p46 = scmp.eq.s32.totalorder %s29, 1
      %p47 = por %p45, %p46
      %p48 = scmp.ne.s32.totalorder %s37, %s38
      %p49 = scmp.eq.s32.totalorder %s29, 0
      %p50 = por %p48, %p49
      %p51 = scmp.ne.s32.totalorder %s37, %s38
      %p52 = scmp.eq.s32.totalorder %s30, 1
      %p53 = por %p51, %p52
      %p55 = scmp.ne.s32.totalorder %s38, %s54
      %p56 = scmp.eq.s32.totalorder %s30, 0
      %p57 = por %p55, %p56
      %s59 = sadd.s32 %s58, 1
      %p62 = scmp.eq.s32.totalorder %s24, 1
      %p63 = scmp.ne.s32.totalorder %s58, %s60
      %p64 = scmp.eq.s32.totalorder %s24, 0
      %p65 = por %p63, %p64
      %p66 = scmp.ne.s32.totalorder %s58, %s60
      %p67 = scmp.eq.s32.totalorder %s29, 1
      %p68 = por %p66, %p67
      %p69 = scmp.ne.s32.totalorder %s60, %s61
      %p70 = scmp.eq.s32.totalorder %s29, 0
      %p71 = por %p69, %p70
      %p72 = scmp.ne.s32.totalorder %s60, %s61
      %p73 = scmp.eq.s32.totalorder %s30, 1
      %p74 = por %p72, %p73
      %p76 = scmp.ne.s32.totalorder %s61, %s75
      %p77 = scmp.eq.s32.totalorder %s30, 0
      %p78 = por %p76, %p77
      %s80 = sadd.s32 %s79, 1
      %p83 = scmp.eq.s32.totalorder %s24, 1
      %p84 = scmp.ne.s32.totalorder %s79, %s81
      %p85 = scmp.eq.s32.totalorder %s24, 0
      %p86 = por %p84, %p85
      %p87 = scmp.ne.s32.totalorder %s79, %s81
      %p88 = scmp.eq.s32.totalorder %s29, 1
      %p89 = por %p87, %p88
      %p90 = scmp.ne.s32.totalorder %s81, %s82
      %p91 = scmp.eq.s32.totalorder %s29, 0
      %p92 = por %p90, %p91
      %p93 = scmp.ne.s32.totalorder %s81, %s82
      %p94 = scmp.eq.s32.totalorder %s30, 1
      %p95 = por %p93, %p94
      %p97 = scmp.ne.s32.totalorder %s82, %s96
      %p98 = scmp.eq.s32.totalorder %s30, 0
      %p99 = por %p97, %p98
      %s101 = sadd.s32 %s100, 1
      %p104 = scmp.eq.s32.totalorder %s24, 1
      %p105 = scmp.ne.s32.totalorder %s100, %s102
      %p106 = scmp.eq.s32.totalorder %s24, 0
      %p107 = por %p105, %p106
      %p108 = scmp.ne.s32.totalorder %s100, %s102
      %p109 = scmp.eq.s32.totalorder %s29, 1
      %p110 = por %p108, %p109
      %p111 = scmp.ne.s32.totalorder %s102, %s103
      %p112 = scmp.eq.s32.totalorder %s29, 0
      %p113 = por %p111, %p112
      %p114 = scmp.ne.s32.totalorder %s102, %s103
      %p115 = scmp.eq.s32.totalorder %s30, 1
      %p116 = por %p114, %p115
      %p118 = scmp.ne.s32.totalorder %s103, %s117
      %p119 = scmp.eq.s32.totalorder %s30, 0
      %p120 = por %p118, %p119
      %s122 = sadd.s32 %s121, 1
      %p125 = scmp.eq.s32.totalorder %s24, 1
      %p126 = scmp.ne.s32.totalorder %s121, %s123
      %p127 = scmp.eq.s32.totalorder %s24, 0
      %p128 = por %p126, %p127
      %p129 = scmp.ne.s32.totalorder %s121, %s123
      %p130 = scmp.eq.s32.totalorder %s29, 1
      %p131 = por %p129, %p130
      %p132 = scmp.ne.s32.totalorder %s123, %s124
      %p133 = scmp.eq.s32.totalorder %s29, 0
      %p134 = por %p132, %p133
      %p135 = scmp.ne.s32.totalorder %s123, %s124
      %p136 = scmp.eq.s32.totalorder %s30, 1
      %p137 = por %p135, %p136
      %p139 = scmp.ne.s32.totalorder %s124, %s138
      %p140 = scmp.eq.s32.totalorder %s30, 0
      %p141 = por %p139, %p140
      %s142 = ssub.s32 %s24, %s31
      %p143 = scmp.eq.s32.totalorder %s142, 0
      %s145 = sadd.s32 %s144, 1
      %s146 = scalar_select %p143, %s144, %s145
      %p149 = pneg %p143
      %p150 = scmp.eq.s32.totalorder %s24, 1
      %p151 = por %p149, %p150
      %p152 = scmp.ne.s32.totalorder %s144, %s147
      %p153 = scmp.eq.s32.totalorder %s24, 0
      %p154 = por %p152, %p153
      %p155 = scmp.ne.s32.totalorder %s144, %s147
      %p156 = scmp.eq.s32.totalorder %s29, 1
      %p157 = por %p155, %p156
      %p158 = scmp.ne.s32.totalorder %s147, %s148
      %p159 = scmp.eq.s32.totalorder %s29, 0
      %p160 = por %p158, %p159
      %p161 = scmp.ne.s32.totalorder %s147, %s148
      %p162 = scmp.eq.s32.totalorder %s30, 1
      %p163 = por %p161, %p162
      %p165 = scmp.ne.s32.totalorder %s148, %s164
      %p166 = scmp.eq.s32.totalorder %s30, 0
      %p167 = por %p165, %p166
      %s168 = ssub.s32 %s24, %s31
      %p169 = scmp.eq.s32.totalorder %s168, 0
      %s171 = sadd.s32 %s170, 1
      %s172 = scalar_select %p169, %s170, %s171
      %p175 = pneg %p169
      %p176 = scmp.eq.s32.totalorder %s24, 1
      %p177 = por %p175, %p176
      %p178 = scmp.ne.s32.totalorder %s170, %s173
      %p179 = scmp.eq.s32.totalorder %s24, 0
      %p180 = por %p178, %p179
      %p181 = scmp.ne.s32.totalorder %s170, %s173
      %p182 = scmp.eq.s32.totalorder %s29, 1
      %p183 = por %p181, %p182
      %p184 = scmp.ne.s32.totalorder %s173, %s174
      %p185 = scmp.eq.s32.totalorder %s29, 0
      %p186 = por %p184, %p185
      %p187 = scmp.ne.s32.totalorder %s173, %s174
      %p188 = scmp.eq.s32.totalorder %s30, 1
      %p189 = por %p187, %p188
      %p191 = scmp.ne.s32.totalorder %s174, %s190
      %p192 = scmp.eq.s32.totalorder %s30, 0
      %p193 = por %p191, %p192
      %p194 = scmp.le.s32.totalorder 1, %s24
      %p195 = scmp.lt.s32.totalorder %s24, 3
      %p196 = pnand %p194, %p195
      %p197 = pneg %p196
      // Predicated region
      $region9: #{down_forward.3} parent=5 // pred_check
        _
      $region10: #{down_forward.3} parent=5 // pred_check_branch
        %199 = sbr.rel (%p196) target = $region12
      $region11: #{down_forward.3} parent=5 // pred_region
        %s200 = ssub.s32 %s24, 1
        // Predicated region
        $region13: #{down_forward.3} parent=11 // pred_check
          %p201 = pneg %p71
        $region14: #{down_forward.3} parent=11 // pred_check_branch
          %203 = sbr.rel (%p201) target = $region16
        $region15: #{down_forward.3} parent=11 // pred_region
          %s205 = ssub.s32 1536, 1536
          %206 = vsyncadd [#allocation6], %s205
          %s207 = sshll.u32 [#allocation5], 4
          %s208 = int_to_ptr.vmem [resolvable:$true] %s207
          %213 = dma.hbm_to_vmem [thread:$0]  %s1, 1536, %s208, [#allocation6], 64, 64, 4
        $region16: #{down_forward.3} parent=11 // pred_fallthru
          _
        // Predicated region
        $region17: #{down_forward.3} parent=11 // pred_check
          %p214 = pneg %p92
        $region18: #{down_forward.3} parent=11 // pred_check_branch
          %216 = sbr.rel (%p214) target = $region20
        $region19: #{down_forward.3} parent=11 // pred_region
          %s218 = ssub.s32 16, 16
          %219 = vsyncadd [#allocation6], %s218
          %s221 = sshll.u32 [#allocation7], 4
          %s222 = int_to_ptr.vmem [resolvable:$true] %s221
          %224 = dma.hbm_to_vmem [thread:$0]  %s2, 16, %s222, [#allocation6]
        $region20: #{down_forward.3} parent=11 // pred_fallthru
          _
        // Predicated region
        $region21: #{down_forward.3} parent=11 // pred_check
          %p225 = pneg %p113
        $region22: #{down_forward.3} parent=11 // pred_check_branch
          %227 = sbr.rel (%p225) target = $region24
        $region23: #{down_forward.3} parent=11 // pred_region
          %s229 = ssub.s32 16, 16
          %230 = vsyncadd [#allocation9], %s229
          %s232 = sshll.u32 [#allocation8], 4
          %s233 = int_to_ptr.vmem [resolvable:$true] %s232
          %235 = dma.hbm_to_vmem [thread:$0]  %s3, 16, %s233, [#allocation9]
        $region24: #{down_forward.3} parent=11 // pred_fallthru
          _
        // Predicated region
        $region25: #{down_forward.3} parent=11 // pred_check
          %p236 = pneg %p134
        $region26: #{down_forward.3} parent=11 // pred_check_branch
          %238 = sbr.rel (%p236) target = $region28
        $region27: #{down_forward.3} parent=11 // pred_region
          %s240 = ssub.s32 16, 16
          %241 = vsyncadd [#allocation9], %s240
          %s243 = sshll.u32 [#allocation10], 4
          %s244 = int_to_ptr.vmem [resolvable:$true] %s243
          %246 = dma.hbm_to_vmem [thread:$0]  %s4, 16, %s244, [#allocation9]
        $region28: #{down_forward.3} parent=11 // pred_fallthru
          _
      $region12: #{down_forward.3} parent=5 // pred_fallthru
        _
      %p247 = scmp.lt.s32.totalorder %s24, 2
      // Predicated region
      $region29: #{down_forward.3} parent=5 // pred_check
        %p248 = pneg %p247
      $region30: #{down_forward.3} parent=5 // pred_check_branch
        %250 = sbr.rel (%p248) target = $region32
      $region31: #{down_forward.3} parent=5 // pred_region
        // Predicated region
        $region33: #{down_forward.3} parent=31 // pred_check
          %p251 = pneg %p44
        $region34: #{down_forward.3} parent=31 // pred_check_branch
          %253 = sbr.rel (%p251) target = $region36
        $region35: #{down_forward.3} parent=31 // pred_region
          %s254 = sand.u32 %s34, 1
          %s255 = scalar_lea.sflag [#allocation3], %s254
          %s256 = sand.u32 %s34, 1
          %s257 = smul.addr %s256, 16
          %s258 = scalar_lea.vmem [#allocation2], %s257
          %s260 = ssub.s32 256, 256
          %261 = vsyncadd %s255, %s260
          %s262 = smul.addr %s24, 2
          %s263 = smul.addr %s262, 128
          %s264 = scalar_lea.hbm %s0, %s263
          %s265 = sshll.u32 %s258, 4
          %s266 = int_to_ptr.vmem [resolvable:$true] %s265
          %271 = dma.hbm_to_vmem [thread:$0]  %s264, 256, %s266, %s255, 128, 128, 8
        $region36: #{down_forward.3} parent=31 // pred_fallthru
          _
      $region32: #{down_forward.3} parent=5 // pred_fallthru
        _
      %p272 = scmp.le.s32.totalorder 1, %s24
      %p273 = scmp.lt.s32.totalorder %s24, 3
      %p274 = pnand %p272, %p273
      %p275 = pneg %p274
      // Predicated region
      $region37: #{down_forward.3} parent=5 // pred_check
        _
      $region38: #{down_forward.3} parent=5 // pred_check_branch
        %277 = sbr.rel (%p274) target = $region40
      $region39: #{down_forward.3} parent=5 // pred_region
        %s278 = ssub.s32 %s24, 1
        %s279 = sand.u32 %s37, 1
        %s280 = scalar_lea.sflag [#allocation3], %s279
        %s281 = sand.u32 %s37, 1
        %s282 = smul.addr %s281, 16
        %s283 = scalar_lea.vmem [#allocation2], %s282
        // Predicated region
        $region41: #{down_forward.3} parent=39 // pred_check
          %p284 = pneg %p50
        $region42: #{down_forward.3} parent=39 // pred_check_branch
          %286 = sbr.rel (%p284) target = $region44
        $region43: #{down_forward.3} parent=39 // pred_region
          %287 = dma.done %s280, 256
        $region44: #{down_forward.3} parent=39 // pred_fallthru
          _
        // Predicated region
        $region45: #{down_forward.3} parent=39 // pred_check
          %p288 = pneg %p71
        $region46: #{down_forward.3} parent=39 // pred_check_branch
          %290 = sbr.rel (%p288) target = $region48
        $region47: #{down_forward.3} parent=39 // pred_region
          %291 = dma.done [#allocation6], 1536
        $region48: #{down_forward.3} parent=39 // pred_fallthru
          _
        // Predicated region
        $region49: #{down_forward.3} parent=39 // pred_check
          %p292 = pneg %p92
        $region50: #{down_forward.3} parent=39 // pred_check_branch
          %294 = sbr.rel (%p292) target = $region52
        $region51: #{down_forward.3} parent=39 // pred_region
          %295 = dma.done [#allocation6], 16
        $region52: #{down_forward.3} parent=39 // pred_fallthru
          _
        // Predicated region
        $region53: #{down_forward.3} parent=39 // pred_check
          %p296 = pneg %p113
        $region54: #{down_forward.3} parent=39 // pred_check_branch
          %298 = sbr.rel (%p296) target = $region56
        $region55: #{down_forward.3} parent=39 // pred_region
          %299 = dma.done [#allocation9], 16
        $region56: #{down_forward.3} parent=39 // pred_fallthru
          _
        // Predicated region
        $region57: #{down_forward.3} parent=39 // pred_check
          %p300 = pneg %p134
        $region58: #{down_forward.3} parent=39 // pred_check_branch
          %302 = sbr.rel (%p300) target = $region60
        $region59: #{down_forward.3} parent=39 // pred_region
          %303 = dma.done [#allocation9], 16
        $region60: #{down_forward.3} parent=39 // pred_fallthru
          _
        %s304 = sand.u32 %s37, 1
        %s305 = scalar_lea.sflag [#allocation3], %s304
        %s306 = sand.u32 %s37, 1
        %s307 = smul.addr %s306, 16
        %s308 = scalar_lea.vmem [#allocation2], %s307
        %p309 = pneg %p50
        %p310 = pneg %p47
        %p311 = pneg %p71
        %p312 = pneg %p68
        %p313 = pneg %p92
        %p314 = pneg %p89
        %p315 = pneg %p113
        %p316 = pneg %p110
        %p317 = pneg %p134
        %p318 = pneg %p131
        %p319 = pneg %p160
        %p320 = pneg %p157
        %s321 = sand.u32 %s147, 1
        %s322 = scalar_lea.sflag [#allocation4], %s321
        %s323 = sand.u32 %s147, 1
        %s324 = smul.addr %s323, 8
        %s325 = scalar_lea.vmem [#allocation11], %s324
        %p326 = pneg %p186
        %p327 = pneg %p183
        %s328 = sand.u32 %s173, 1
        %s329 = scalar_lea.sflag [#allocation13], %s328
        %s330 = sand.u32 %s173, 1
        %s331 = smul.addr %s330, 8
        %s332 = scalar_lea.vmem [#allocation12], %s331
        %v334 = vld [vmem:[%s283] sm:$0xff]
        %v335 = vld [vmem:[%s283 + $0x8] sm:$0xff]
        %vm338 = vcmask 1040384
        %v339 = vrot.slane %v334, 7
        %v340 = vrot.slane %v335, 7
        %v341 = vsel %vm338, %v339, %v340
        %v344 = vsel %vm338, 0.0, %v339
        %vm345 = vcmask 1046528
        %v346 = vrot.slane %v334, 1
        %v347 = vrot.slane %v335, 1
        %v348 = vsel %vm345, %v346, %v347
        %v351 = vsel %vm345, %v347, 0.0
        %352 = vrot.lane.b32.xlu0 %v334, 64
        %v353 = vpop.permute.xlu0 %352
        %354 = vrot.lane.b32.xlu0 %v335, 64
        %v355 = vpop.permute.xlu0 %354
        %vm358 = vcmask 523264
        %v359 = vsel %vm358, %v344, %v353
        %v360 = vsel %vm358, %v341, %v355
        %v361 = vpack.c.bf16 %v360, %v359
        %v362 = vpack.c.bf16 %v351, %v348
        %v363 = vld [vmem:[#allocation5] sm:$0xf]
        %v364 = vld [vmem:[#allocation5 + $0x4] sm:$0xf]
        %v365 = vld [vmem:[#allocation5 + $0x8] sm:$0xf]
        %v366 = vld [vmem:[#allocation5 + $0xc] sm:$0xf]
        %v367 = vld [vmem:[#allocation5 + $0x10] sm:$0xf]
        %v368 = vld [vmem:[#allocation5 + $0x14] sm:$0xf]
        %v369 = vld [vmem:[#allocation5 + $0x18] sm:$0xf]
        %v370 = vld [vmem:[#allocation5 + $0x1c] sm:$0xf]
        %v371 = vld [vmem:[#allocation5 + $0x20] sm:$0xf]
        %v372 = vld [vmem:[#allocation5 + $0x24] sm:$0xf]
        %v373 = vld [vmem:[#allocation5 + $0x28] sm:$0xf]
        %v374 = vld [vmem:[#allocation5 + $0x2c] sm:$0xf]
        %v375 = vld [vmem:[#allocation5 + $0x30] sm:$0xf]
        %v376 = vld [vmem:[#allocation5 + $0x34] sm:$0xf]
        %v377 = vld [vmem:[#allocation5 + $0x38] sm:$0xf]
        %v378 = vld [vmem:[#allocation5 + $0x3c] sm:$0xf]
        %v379 = vld [vmem:[#allocation5 + $0x40] sm:$0xf]
        %v380 = vld [vmem:[#allocation5 + $0x44] sm:$0xf]
        %v381 = vld [vmem:[#allocation5 + $0x48] sm:$0xf]
        %v382 = vld [vmem:[#allocation5 + $0x4c] sm:$0xf]
        %v383 = vld [vmem:[#allocation5 + $0x50] sm:$0xf]
        %v384 = vld [vmem:[#allocation5 + $0x54] sm:$0xf]
        %v385 = vld [vmem:[#allocation5 + $0x58] sm:$0xf]
        %v386 = vld [vmem:[#allocation5 + $0x5c] sm:$0xf]
        %v387 = vld [vmem:[#allocation7] sm:$0x1]
        %v389 = vlaneseq
        %v390 = vshrl.u32 %v389, 7
        %v391 = vsub.s32 0, %v390
        %v392 = vrot.slane %v387, %v391
        %v418 = vunpack.c.l.b16 %v363
        %v419 = vunpack.c.l.b16 %v364
        %v420 = vunpack.c.l.b16 %v365
        %v421 = vunpack.c.l.b16 %v366
        %v422 = vunpack.c.l.b16 %v367
        %v423 = vunpack.c.l.b16 %v368
        %v424 = vunpack.c.l.b16 %v369
        %v425 = vunpack.c.l.b16 %v370
        %v426 = vunpack.c.l.b16 %v371
        %v427 = vunpack.c.l.b16 %v372
        %v428 = vunpack.c.l.b16 %v373
        %v429 = vunpack.c.l.b16 %v374
        %v430 = vunpack.c.l.b16 %v375
        %v431 = vunpack.c.l.b16 %v376
        %v432 = vunpack.c.l.b16 %v377
        %v433 = vunpack.c.l.b16 %v378
        %v434 = vunpack.c.l.b16 %v379
        %v435 = vunpack.c.l.b16 %v380
        %v436 = vunpack.c.l.b16 %v381
        %v437 = vunpack.c.l.b16 %v382
        %v438 = vunpack.c.l.b16 %v383
        %v439 = vunpack.c.l.b16 %v384
        %v440 = vunpack.c.l.b16 %v385
        %v441 = vunpack.c.l.b16 %v386
        %v442 = vpack.c.b16 %v419, %v418
        %v443 = vpack.c.b16 %v421, %v420
        %v444 = vpack.c.b16 %v423, %v422
        %v445 = vpack.c.b16 %v425, %v424
        %v446 = vpack.c.b16 %v427, %v426
        %v447 = vpack.c.b16 %v429, %v428
        %v448 = vpack.c.b16 %v431, %v430
        %v449 = vpack.c.b16 %v433, %v432
        %v450 = vpack.c.b16 %v435, %v434
        %v451 = vpack.c.b16 %v437, %v436
        %v452 = vpack.c.b16 %v439, %v438
        %v453 = vpack.c.b16 %v441, %v440
        %v467 = vsel %vm358, %v362, 0
        %469 = vmatprep.subr.bf16.mxu0 0
        %470 = vmatpush1.bf16.msra.mxu0 %v442
        %471 = vmatprep.subr.bf16.mxu0 0
        %472 = vmatpush1.bf16.msra.mxu0 %v443
        %473 = vmatprep.subr.bf16.mxu0 0
        %474 = vmatpush1.bf16.msra.mxu0 %v444
        %475 = vmatprep.subr.bf16.mxu0 0
        %476 = vmatpush1.bf16.msra.mxu0 %v445
        %477 = vmatprep.subr.bf16.mxu0 0
        %478 = vmatpush1.bf16.msra.mxu0 %v446
        %479 = vmatprep.subr.bf16.mxu0 0
        %480 = vmatpush1.bf16.msra.mxu0 %v447
        %481 = vmatprep.subr.bf16.mxu0 0
        %482 = vmatpush1.bf16.msra.mxu0 %v448
        %483 = vmatprep.subr.bf16.mxu0 0
        %484 = vmatpush1.bf16.msra.mxu0 %v449
        %485 = vmatprep.subr.bf16.mxu0 0
        %486 = vmatpush1.bf16.msra.mxu0 %v450
        %487 = vmatprep.subr.bf16.mxu0 0
        %488 = vmatpush1.bf16.msra.mxu0 %v451
        %489 = vmatprep.subr.bf16.mxu0 0
        %490 = vmatpush1.bf16.msra.mxu0 %v452
        %491 = vmatprep.subr.bf16.mxu0 0
        %492 = vmatpush1.bf16.msra.mxu0 %v453
        %493 = vmatprep.subr.bf16.mxu0 0
        %494 = vmatpush1.bf16.msra.mxu0 0
        %495 = vmatprep.subr.bf16.mxu0 0
        %496 = vmatpush1.bf16.msra.mxu0 0
        %497 = vmatprep.subr.bf16.mxu0 0
        %498 = vmatpush1.bf16.msra.mxu0 0
        %499 = vmatprep.subr.bf16.mxu0 0
        %500 = vmatpush1.bf16.msra.mxu0 0
        %501 = vmatprep.mubr.bf16.mxu0 %v467
        %502 = vmatmul.mubr.bf16.gmra.mrb[0].mxu0 %v361
        %v503 = vpop.f32.mrb[0].mxu0
        %v504 = vadd.f32 %v392, %v503
        %v505 = vpop.f32.mrb[0].mxu0
        %v506 = vpop.f32.mrb[0].mxu0
        %v507 = vadd.f32 %v392, %v506
        %v508 = vpop.f32.mrb[0].mxu0
        %509 = vdwg.mxu0
        %v510 = vpack.c.bf16 %v507, %v504
        %v512 = vunpack.c.l.b16 %v510
        %v513 = vunpack.c.h.b16 %v510
        %v514 = vpack.c.b16 %v512, %v512
        %v515 = vpack.c.b16 %v513, %v513
        %518 = vst [vmem:[%s325] sm:$0xf] %v514
        %519 = vst [vmem:[%s325 + $0x4] sm:$0xf] %v515
        %v520 = vadd.f32 %v504, %v507
        %v521 = vrot.slane %v520, 4
        %v522 = vadd.f32 %v520, %v521
        %v523 = vrot.slane %v522, 2
        %v524 = vadd.f32 %v522, %v523
        %v525 = vrot.slane %v524, 1
        %v526 = vadd.f32 %v524, %v525
        %v527 = vmul.f32 %v504, %v504
        %v528 = vmul.f32 %v507, %v507
        %v529 = vadd.f32 %v527, %v528
        %v530 = vrot.slane %v529, 4
        %v531 = vadd.f32 %v529, %v530
        %v532 = vrot.slane %v531, 2
        %v533 = vadd.f32 %v531, %v532
        %v534 = vrot.slane %v533, 1
        %v535 = vadd.f32 %v533, %v534
        %v536 = vsel %vm338, %v526, %v535
        %vm537 = vcmask 1041408
        %v538 = vsel %vm537, %v536, 0.0
        %539 = vst [vmem:[%s332] sm:$0xff] %v538
        %s540 = sand.u32 %s147, 1
        %s541 = scalar_lea.sflag [#allocation4], %s540
        %s542 = sand.u32 %s147, 1
        %s543 = smul.addr %s542, 8
        %s544 = scalar_lea.vmem [#allocation11], %s543
        %s545 = sand.u32 %s173, 1
        %s546 = scalar_lea.sflag [#allocation13], %s545
        %s547 = sand.u32 %s173, 1
        %s548 = smul.addr %s547, 8
        %s549 = scalar_lea.vmem [#allocation12], %s548
        // Predicated region
        $region61: #{down_forward.3} parent=39 // pred_check
          %p550 = pneg %p157
        $region62: #{down_forward.3} parent=39 // pred_check_branch
          %552 = sbr.rel (%p550) target = $region64
        $region63: #{down_forward.3} parent=39 // pred_region
          %s554 = ssub.s32 128, 128
          %555 = vsyncadd %s541, %s554
          %s556 = smul.addr %s29, 2
          %s557 = smul.addr %s556, 64
          %s558 = scalar_lea.hbm %s5, %s557
          %s559 = sshll.u32 %s544, 4
          %s560 = int_to_ptr.vmem [resolvable:$true] %s559
          %565 = dma.vmem_to_hbm [thread:$0]  %s560, 128, %s558, %s541, 64, 64, 4
        $region64: #{down_forward.3} parent=39 // pred_fallthru
          _
        // Predicated region
        $region65: #{down_forward.3} parent=39 // pred_check
          %p566 = pneg %p183
        $region66: #{down_forward.3} parent=39 // pred_check_branch
          %568 = sbr.rel (%p566) target = $region68
        $region67: #{down_forward.3} parent=39 // pred_region
          %s570 = ssub.s32 128, 128
          %571 = vsyncadd %s546, %s570
          %s572 = smul.addr %s29, 128
          %s573 = scalar_lea.hbm %s6, %s572
          %s575 = sshll.u32 %s549, 4
          %s576 = int_to_ptr.vmem [resolvable:$true] %s575
          %578 = dma.vmem_to_hbm [thread:$0]  %s576, 128, %s573, %s546
        $region68: #{down_forward.3} parent=39 // pred_fallthru
          _
      $region40: #{down_forward.3} parent=5 // pred_fallthru
        _
      %p579 = scmp.le.s32.totalorder 2, %s24
      // Predicated region
      $region69: #{down_forward.3} parent=5 // pred_check
        %p580 = pneg %p579
      $region70: #{down_forward.3} parent=5 // pred_check_branch
        %582 = sbr.rel (%p580) target = $region72
      $region71: #{down_forward.3} parent=5 // pred_region
        %s583 = ssub.s32 %s24, 2
        // Predicated region
        $region73: #{down_forward.3} parent=71 // pred_check
          %p584 = pneg %p163
        $region74: #{down_forward.3} parent=71 // pred_check_branch
          %586 = sbr.rel (%p584) target = $region76
        $region75: #{down_forward.3} parent=71 // pred_region
          %s587 = sand.u32 %s148, 1
          %s588 = scalar_lea.sflag [#allocation4], %s587
          %s589 = sand.u32 %s148, 1
          %s590 = smul.addr %s589, 8
          %s591 = scalar_lea.vmem [#allocation11], %s590
          %592 = dma.done %s588, 128
        $region76: #{down_forward.3} parent=71 // pred_fallthru
          _
        // Predicated region
        $region77: #{down_forward.3} parent=71 // pred_check
          %p593 = pneg %p189
        $region78: #{down_forward.3} parent=71 // pred_check_branch
          %595 = sbr.rel (%p593) target = $region80
        $region79: #{down_forward.3} parent=71 // pred_region
          %s596 = sand.u32 %s174, 1
          %s597 = scalar_lea.sflag [#allocation13], %s596
          %s598 = sand.u32 %s174, 1
          %s599 = smul.addr %s598, 8
          %s600 = scalar_lea.vmem [#allocation12], %s599
          %601 = dma.done %s597, 128
        $region80: #{down_forward.3} parent=71 // pred_fallthru
          _
      $region72: #{down_forward.3} parent=5 // pred_fallthru
        _
    $region6: #{down_forward.3} parent=1 // loop_footer
      %s28 = sadd.s32 1, %s24
    $region7: #{down_forward.3} parent=1 // loop_footer_branch
      %23 = sbr.rel target = $region3
    $region8: #{down_forward.3} parent=1 // loop_exit
      _
    %602 = vsyncpa [#allocation3], 1
    %s603 = scalar_lea.sflag [#allocation3], 1
    %604 = vsyncpa %s603, 1
    %605 = vsyncpa [#allocation6], 1
    %606 = vsyncpa [#allocation9], 1
    %607 = vsyncpa [#allocation4], 1
    %s608 = scalar_lea.sflag [#allocation4], 1
    %609 = vsyncpa %s608, 1
    %610 = vsyncpa [#allocation13], 1
    %s611 = scalar_lea.sflag [#allocation13], 1
    %612 = vsyncpa %s611, 1

// kernel: down_forward.4
$region0: #{down_forward.4}
  #allocation0 [shape = 'u32[]', space=smem, size = 0x4, offset = 0x4, fixed_abs, tag = 'smem constant byte address 0x4 - core index']
  #allocation1 [shape = 'u32[144,128]{1,0:T(1,128)}', space=vmem, size = 0x12000, scoped, tag = 'internal scratch']
  %s0 = inlined_call_operand.hbm [shape: bf16[2,16,128], index: 0, kind: input, shape index: {}]
  %s1 = inlined_call_operand.hbm [shape: bf16[384,128], index: 1, kind: input, shape index: {}]
  %s2 = inlined_call_operand.hbm [shape: f32[1,128], index: 2, kind: input, shape index: {}]
  %s3 = inlined_call_operand.hbm [shape: f32[1,128], index: 3, kind: input, shape index: {}]
  %s4 = inlined_call_operand.hbm [shape: f32[1,128], index: 4, kind: input, shape index: {}]
  %s5 = inlined_call_operand.hbm [shape: bf16[2,16,128], index: 5, kind: output, shape index: {0}]
  %s6 = inlined_call_operand.hbm [shape: f32[2,8,128], index: 6, kind: output, shape index: {1}]
  %7 = xla_tuple %s5, %s6
  %s8 = sld [smem:[#allocation0]]
  $region81: #{down_forward.4} parent=0
    _
  %s10 = ssub.s32 1, %s8
  %s11 = scalar_select 0, %s10, %s8
  $region1: #{down_forward.4} parent=0
    #allocation2 [shape = 'u8[8192]{0}', space=vmem, size = 0x2000, scoped, tag = 'input window, operand 0']
    #allocation3 [shape = 's32[2]{0}', space=sflag, size = 0x8, scoped, tag = 'scoped memory for down_forward.4']
    #allocation4 [shape = 's32[2]{0}', space=sflag, size = 0x8, scoped, tag = 'scoped memory for down_forward.4']
    #allocation5 [shape = 'u8[98304]{0}', space=vmem, size = 0x18000, scoped, tag = 'input window, operand 1, single buffered']
    #allocation6 [shape = 's32[1]{0}', space=sflag, size = 0x4, scoped, tag = 'scoped memory for down_forward.4']
    #allocation7 [shape = 'u8[512]{0}', space=vmem, size = 0x400, scoped, tag = 'input window, operand 2, single buffered']
    #allocation8 [shape = 'u8[512]{0}', space=vmem, size = 0x400, scoped, tag = 'input window, operand 3, single buffered']
    #allocation9 [shape = 's32[1]{0}', space=sflag, size = 0x4, scoped, tag = 'scoped memory for down_forward.4']
    #allocation10 [shape = 'u8[512]{0}', space=vmem, size = 0x400, scoped, tag = 'input window, operand 4, single buffered']
    #allocation11 [shape = 'u8[8192]{0}', space=vmem, size = 0x2000, scoped, tag = 'output window, operand 0']
    #allocation12 [shape = 'u8[8192]{0}', space=vmem, size = 0x2000, scoped, tag = 'output window, operand 1']
    #allocation13 [shape = 's32[2]{0}', space=sflag, size = 0x8, scoped, tag = 'scoped memory for down_forward.4']
    %12 = vsyncpa [#allocation3], 0
    %s13 = scalar_lea.sflag [#allocation3], 1
    %14 = vsyncpa %s13, 0
    %15 = vsyncpa [#allocation6], 0
    %16 = vsyncpa [#allocation9], 0
    %17 = vsyncpa [#allocation4], 0
    %s18 = scalar_lea.sflag [#allocation4], 1
    %19 = vsyncpa %s18, 0
    %20 = vsyncpa [#allocation13], 0
    %s21 = scalar_lea.sflag [#allocation13], 1
    %22 = vsyncpa %s21, 0
    loop: start=0, step=1, limit=4
    $region2: #{down_forward.4} parent=1 // loop_pre_header
      _
    $region3: #{down_forward.4} parent=1 // loop_header
      %s24 = sphi 0, %s28
      %p25 = scmp.ge.s32.totalorder %s24, 4
      %s34 = sphi 0, %s36
      %s37 = sphi 0, %s34
      %s38 = sphi 0, %s37
      %s54 = sphi 0, %s38
      %s58 = sphi 0, %s58
      %s60 = sphi 0, %s58
      %s61 = sphi 0, %s60
      %s75 = sphi 0, %s61
      %s79 = sphi 0, %s79
      %s81 = sphi 0, %s79
      %s82 = sphi 0, %s81
      %s96 = sphi 0, %s82
      %s100 = sphi 0, %s100
      %s102 = sphi 0, %s100
      %s103 = sphi 0, %s102
      %s117 = sphi 0, %s103
      %s121 = sphi 0, %s121
      %s123 = sphi 0, %s121
      %s124 = sphi 0, %s123
      %s138 = sphi 0, %s124
      %s144 = sphi 0, %s146
      %s147 = sphi 0, %s144
      %s148 = sphi 0, %s147
      %s164 = sphi 0, %s148
      %s170 = sphi 0, %s172
      %s173 = sphi 0, %s170
      %s174 = sphi 0, %s173
      %s190 = sphi 0, %s174
    $region4: #{down_forward.4} parent=1 // loop_header_branch
      %27 = sbr.rel (%p25) target = $region8
    $region5: #{down_forward.4} parent=1 // loop_body
      %s29 = ssub.s32 %s24, 1
      %s30 = ssub.s32 %s24, 2
      %s31 = sadd.s32 %s24, 1
      %s32 = ssub.s32 %s24, %s31
      %p33 = scmp.eq.s32.totalorder %s32, 0
      %s35 = sadd.s32 %s34, 1
      %s36 = scalar_select %p33, %s34, %s35
      %p39 = pneg %p33
      %p40 = scmp.eq.s32.totalorder %s24, 1
      %p41 = por %p39, %p40
      %p42 = scmp.ne.s32.totalorder %s34, %s37
      %p43 = scmp.eq.s32.totalorder %s24, 0
      %p44 = por %p42, %p43
      %p45 = scmp.ne.s32.totalorder %s34, %s37
      %p46 = scmp.eq.s32.totalorder %s29, 1
      %p47 = por %p45, %p46
      %p48 = scmp.ne.s32.totalorder %s37, %s38
      %p49 = scmp.eq.s32.totalorder %s29, 0
      %p50 = por %p48, %p49
      %p51 = scmp.ne.s32.totalorder %s37, %s38
      %p52 = scmp.eq.s32.totalorder %s30, 1
      %p53 = por %p51, %p52
      %p55 = scmp.ne.s32.totalorder %s38, %s54
      %p56 = scmp.eq.s32.totalorder %s30, 0
      %p57 = por %p55, %p56
      %s59 = sadd.s32 %s58, 1
      %p62 = scmp.eq.s32.totalorder %s24, 1
      %p63 = scmp.ne.s32.totalorder %s58, %s60
      %p64 = scmp.eq.s32.totalorder %s24, 0
      %p65 = por %p63, %p64
      %p66 = scmp.ne.s32.totalorder %s58, %s60
      %p67 = scmp.eq.s32.totalorder %s29, 1
      %p68 = por %p66, %p67
      %p69 = scmp.ne.s32.totalorder %s60, %s61
      %p70 = scmp.eq.s32.totalorder %s29, 0
      %p71 = por %p69, %p70
      %p72 = scmp.ne.s32.totalorder %s60, %s61
      %p73 = scmp.eq.s32.totalorder %s30, 1
      %p74 = por %p72, %p73
      %p76 = scmp.ne.s32.totalorder %s61, %s75
      %p77 = scmp.eq.s32.totalorder %s30, 0
      %p78 = por %p76, %p77
      %s80 = sadd.s32 %s79, 1
      %p83 = scmp.eq.s32.totalorder %s24, 1
      %p84 = scmp.ne.s32.totalorder %s79, %s81
      %p85 = scmp.eq.s32.totalorder %s24, 0
      %p86 = por %p84, %p85
      %p87 = scmp.ne.s32.totalorder %s79, %s81
      %p88 = scmp.eq.s32.totalorder %s29, 1
      %p89 = por %p87, %p88
      %p90 = scmp.ne.s32.totalorder %s81, %s82
      %p91 = scmp.eq.s32.totalorder %s29, 0
      %p92 = por %p90, %p91
      %p93 = scmp.ne.s32.totalorder %s81, %s82
      %p94 = scmp.eq.s32.totalorder %s30, 1
      %p95 = por %p93, %p94
      %p97 = scmp.ne.s32.totalorder %s82, %s96
      %p98 = scmp.eq.s32.totalorder %s30, 0
      %p99 = por %p97, %p98
      %s101 = sadd.s32 %s100, 1
      %p104 = scmp.eq.s32.totalorder %s24, 1
      %p105 = scmp.ne.s32.totalorder %s100, %s102
      %p106 = scmp.eq.s32.totalorder %s24, 0
      %p107 = por %p105, %p106
      %p108 = scmp.ne.s32.totalorder %s100, %s102
      %p109 = scmp.eq.s32.totalorder %s29, 1
      %p110 = por %p108, %p109
      %p111 = scmp.ne.s32.totalorder %s102, %s103
      %p112 = scmp.eq.s32.totalorder %s29, 0
      %p113 = por %p111, %p112
      %p114 = scmp.ne.s32.totalorder %s102, %s103
      %p115 = scmp.eq.s32.totalorder %s30, 1
      %p116 = por %p114, %p115
      %p118 = scmp.ne.s32.totalorder %s103, %s117
      %p119 = scmp.eq.s32.totalorder %s30, 0
      %p120 = por %p118, %p119
      %s122 = sadd.s32 %s121, 1
      %p125 = scmp.eq.s32.totalorder %s24, 1
      %p126 = scmp.ne.s32.totalorder %s121, %s123
      %p127 = scmp.eq.s32.totalorder %s24, 0
      %p128 = por %p126, %p127
      %p129 = scmp.ne.s32.totalorder %s121, %s123
      %p130 = scmp.eq.s32.totalorder %s29, 1
      %p131 = por %p129, %p130
      %p132 = scmp.ne.s32.totalorder %s123, %s124
      %p133 = scmp.eq.s32.totalorder %s29, 0
      %p134 = por %p132, %p133
      %p135 = scmp.ne.s32.totalorder %s123, %s124
      %p136 = scmp.eq.s32.totalorder %s30, 1
      %p137 = por %p135, %p136
      %p139 = scmp.ne.s32.totalorder %s124, %s138
      %p140 = scmp.eq.s32.totalorder %s30, 0
      %p141 = por %p139, %p140
      %s142 = ssub.s32 %s24, %s31
      %p143 = scmp.eq.s32.totalorder %s142, 0
      %s145 = sadd.s32 %s144, 1
      %s146 = scalar_select %p143, %s144, %s145
      %p149 = pneg %p143
      %p150 = scmp.eq.s32.totalorder %s24, 1
      %p151 = por %p149, %p150
      %p152 = scmp.ne.s32.totalorder %s144, %s147
      %p153 = scmp.eq.s32.totalorder %s24, 0
      %p154 = por %p152, %p153
      %p155 = scmp.ne.s32.totalorder %s144, %s147
      %p156 = scmp.eq.s32.totalorder %s29, 1
      %p157 = por %p155, %p156
      %p158 = scmp.ne.s32.totalorder %s147, %s148
      %p159 = scmp.eq.s32.totalorder %s29, 0
      %p160 = por %p158, %p159
      %p161 = scmp.ne.s32.totalorder %s147, %s148
      %p162 = scmp.eq.s32.totalorder %s30, 1
      %p163 = por %p161, %p162
      %p165 = scmp.ne.s32.totalorder %s148, %s164
      %p166 = scmp.eq.s32.totalorder %s30, 0
      %p167 = por %p165, %p166
      %s168 = ssub.s32 %s24, %s31
      %p169 = scmp.eq.s32.totalorder %s168, 0
      %s171 = sadd.s32 %s170, 1
      %s172 = scalar_select %p169, %s170, %s171
      %p175 = pneg %p169
      %p176 = scmp.eq.s32.totalorder %s24, 1
      %p177 = por %p175, %p176
      %p178 = scmp.ne.s32.totalorder %s170, %s173
      %p179 = scmp.eq.s32.totalorder %s24, 0
      %p180 = por %p178, %p179
      %p181 = scmp.ne.s32.totalorder %s170, %s173
      %p182 = scmp.eq.s32.totalorder %s29, 1
      %p183 = por %p181, %p182
      %p184 = scmp.ne.s32.totalorder %s173, %s174
      %p185 = scmp.eq.s32.totalorder %s29, 0
      %p186 = por %p184, %p185
      %p187 = scmp.ne.s32.totalorder %s173, %s174
      %p188 = scmp.eq.s32.totalorder %s30, 1
      %p189 = por %p187, %p188
      %p191 = scmp.ne.s32.totalorder %s174, %s190
      %p192 = scmp.eq.s32.totalorder %s30, 0
      %p193 = por %p191, %p192
      %p194 = scmp.le.s32.totalorder 1, %s24
      %p195 = scmp.lt.s32.totalorder %s24, 3
      %p196 = pnand %p194, %p195
      %p197 = pneg %p196
      // Predicated region
      $region9: #{down_forward.4} parent=5 // pred_check
        _
      $region10: #{down_forward.4} parent=5 // pred_check_branch
        %199 = sbr.rel (%p196) target = $region12
      $region11: #{down_forward.4} parent=5 // pred_region
        %s200 = ssub.s32 %s24, 1
        // Predicated region
        $region13: #{down_forward.4} parent=11 // pred_check
          %p201 = pneg %p71
        $region14: #{down_forward.4} parent=11 // pred_check_branch
          %203 = sbr.rel (%p201) target = $region16
        $region15: #{down_forward.4} parent=11 // pred_region
          %s205 = ssub.s32 3072, 3072
          %206 = vsyncadd [#allocation6], %s205
          %s207 = sshll.u32 [#allocation5], 4
          %s208 = int_to_ptr.vmem [resolvable:$true] %s207
          %213 = dma.hbm_to_vmem [thread:$0]  %s1, 3072, %s208, [#allocation6], 64, 64, 4
        $region16: #{down_forward.4} parent=11 // pred_fallthru
          _
        // Predicated region
        $region17: #{down_forward.4} parent=11 // pred_check
          %p214 = pneg %p92
        $region18: #{down_forward.4} parent=11 // pred_check_branch
          %216 = sbr.rel (%p214) target = $region20
        $region19: #{down_forward.4} parent=11 // pred_region
          %s218 = ssub.s32 16, 16
          %219 = vsyncadd [#allocation6], %s218
          %s221 = sshll.u32 [#allocation7], 4
          %s222 = int_to_ptr.vmem [resolvable:$true] %s221
          %224 = dma.hbm_to_vmem [thread:$0]  %s2, 16, %s222, [#allocation6]
        $region20: #{down_forward.4} parent=11 // pred_fallthru
          _
        // Predicated region
        $region21: #{down_forward.4} parent=11 // pred_check
          %p225 = pneg %p113
        $region22: #{down_forward.4} parent=11 // pred_check_branch
          %227 = sbr.rel (%p225) target = $region24
        $region23: #{down_forward.4} parent=11 // pred_region
          %s229 = ssub.s32 16, 16
          %230 = vsyncadd [#allocation9], %s229
          %s232 = sshll.u32 [#allocation8], 4
          %s233 = int_to_ptr.vmem [resolvable:$true] %s232
          %235 = dma.hbm_to_vmem [thread:$0]  %s3, 16, %s233, [#allocation9]
        $region24: #{down_forward.4} parent=11 // pred_fallthru
          _
        // Predicated region
        $region25: #{down_forward.4} parent=11 // pred_check
          %p236 = pneg %p134
        $region26: #{down_forward.4} parent=11 // pred_check_branch
          %238 = sbr.rel (%p236) target = $region28
        $region27: #{down_forward.4} parent=11 // pred_region
          %s240 = ssub.s32 16, 16
          %241 = vsyncadd [#allocation9], %s240
          %s243 = sshll.u32 [#allocation10], 4
          %s244 = int_to_ptr.vmem [resolvable:$true] %s243
          %246 = dma.hbm_to_vmem [thread:$0]  %s4, 16, %s244, [#allocation9]
        $region28: #{down_forward.4} parent=11 // pred_fallthru
          _
      $region12: #{down_forward.4} parent=5 // pred_fallthru
        _
      %p247 = scmp.lt.s32.totalorder %s24, 2
      // Predicated region
      $region29: #{down_forward.4} parent=5 // pred_check
        %p248 = pneg %p247
      $region30: #{down_forward.4} parent=5 // pred_check_branch
        %250 = sbr.rel (%p248) target = $region32
      $region31: #{down_forward.4} parent=5 // pred_region
        // Predicated region
        $region33: #{down_forward.4} parent=31 // pred_check
          %p251 = pneg %p44
        $region34: #{down_forward.4} parent=31 // pred_check_branch
          %253 = sbr.rel (%p251) target = $region36
        $region35: #{down_forward.4} parent=31 // pred_region
          %s254 = sand.u32 %s34, 1
          %s255 = scalar_lea.sflag [#allocation3], %s254
          %s256 = sand.u32 %s34, 1
          %s257 = smul.addr %s256, 8
          %s258 = scalar_lea.vmem [#allocation2], %s257
          %s260 = ssub.s32 128, 128
          %261 = vsyncadd %s255, %s260
          %s262 = smul.addr %s24, 2
          %s263 = smul.addr %s262, 64
          %s264 = scalar_lea.hbm %s0, %s263
          %s265 = sshll.u32 %s258, 4
          %s266 = int_to_ptr.vmem [resolvable:$true] %s265
          %271 = dma.hbm_to_vmem [thread:$0]  %s264, 128, %s266, %s255, 64, 64, 4
        $region36: #{down_forward.4} parent=31 // pred_fallthru
          _
      $region32: #{down_forward.4} parent=5 // pred_fallthru
        _
      %p272 = scmp.le.s32.totalorder 1, %s24
      %p273 = scmp.lt.s32.totalorder %s24, 3
      %p274 = pnand %p272, %p273
      %p275 = pneg %p274
      // Predicated region
      $region37: #{down_forward.4} parent=5 // pred_check
        _
      $region38: #{down_forward.4} parent=5 // pred_check_branch
        %277 = sbr.rel (%p274) target = $region40
      $region39: #{down_forward.4} parent=5 // pred_region
        %s278 = ssub.s32 %s24, 1
        %s279 = sand.u32 %s37, 1
        %s280 = scalar_lea.sflag [#allocation3], %s279
        %s281 = sand.u32 %s37, 1
        %s282 = smul.addr %s281, 8
        %s283 = scalar_lea.vmem [#allocation2], %s282
        // Predicated region
        $region41: #{down_forward.4} parent=39 // pred_check
          %p284 = pneg %p50
        $region42: #{down_forward.4} parent=39 // pred_check_branch
          %286 = sbr.rel (%p284) target = $region44
        $region43: #{down_forward.4} parent=39 // pred_region
          %287 = dma.done %s280, 128
        $region44: #{down_forward.4} parent=39 // pred_fallthru
          _
        // Predicated region
        $region45: #{down_forward.4} parent=39 // pred_check
          %p288 = pneg %p71
        $region46: #{down_forward.4} parent=39 // pred_check_branch
          %290 = sbr.rel (%p288) target = $region48
        $region47: #{down_forward.4} parent=39 // pred_region
          %291 = dma.done [#allocation6], 3072
        $region48: #{down_forward.4} parent=39 // pred_fallthru
          _
        // Predicated region
        $region49: #{down_forward.4} parent=39 // pred_check
          %p292 = pneg %p92
        $region50: #{down_forward.4} parent=39 // pred_check_branch
          %294 = sbr.rel (%p292) target = $region52
        $region51: #{down_forward.4} parent=39 // pred_region
          %295 = dma.done [#allocation6], 16
        $region52: #{down_forward.4} parent=39 // pred_fallthru
          _
        // Predicated region
        $region53: #{down_forward.4} parent=39 // pred_check
          %p296 = pneg %p113
        $region54: #{down_forward.4} parent=39 // pred_check_branch
          %298 = sbr.rel (%p296) target = $region56
        $region55: #{down_forward.4} parent=39 // pred_region
          %299 = dma.done [#allocation9], 16
        $region56: #{down_forward.4} parent=39 // pred_fallthru
          _
        // Predicated region
        $region57: #{down_forward.4} parent=39 // pred_check
          %p300 = pneg %p134
        $region58: #{down_forward.4} parent=39 // pred_check_branch
          %302 = sbr.rel (%p300) target = $region60
        $region59: #{down_forward.4} parent=39 // pred_region
          %303 = dma.done [#allocation9], 16
        $region60: #{down_forward.4} parent=39 // pred_fallthru
          _
        %s304 = sand.u32 %s37, 1
        %s305 = scalar_lea.sflag [#allocation3], %s304
        %s306 = sand.u32 %s37, 1
        %s307 = smul.addr %s306, 8
        %s308 = scalar_lea.vmem [#allocation2], %s307
        %p309 = pneg %p50
        %p310 = pneg %p47
        %p311 = pneg %p71
        %p312 = pneg %p68
        %p313 = pneg %p92
        %p314 = pneg %p89
        %p315 = pneg %p113
        %p316 = pneg %p110
        %p317 = pneg %p134
        %p318 = pneg %p131
        %p319 = pneg %p160
        %p320 = pneg %p157
        %s321 = sand.u32 %s147, 1
        %s322 = scalar_lea.sflag [#allocation4], %s321
        %s323 = sand.u32 %s147, 1
        %s324 = smul.addr %s323, 8
        %s325 = scalar_lea.vmem [#allocation11], %s324
        %p326 = pneg %p186
        %p327 = pneg %p183
        %s328 = sand.u32 %s173, 1
        %s329 = scalar_lea.sflag [#allocation13], %s328
        %s330 = sand.u32 %s173, 1
        %s331 = smul.addr %s330, 8
        %s332 = scalar_lea.vmem [#allocation12], %s331
        %v334 = vld [vmem:[%s283] sm:$0xf]
        %v335 = vld [vmem:[%s283 + $0x4] sm:$0xf]
        %v336 = vunpack.c.l.bf16 %v334
        %v337 = vunpack.c.l.bf16 %v335
        %v338 = vld [vmem:[#allocation8] sm:$0x1]
        %v340 = vlaneseq
        %v341 = vshrl.u32 %v340, 7
        %v342 = vsub.s32 0, %v341
        %v343 = vrot.slane %v338, %v342
        %v345 = vmul.f32 %v336, %v343
        %v346 = vmul.f32 %v337, %v343
        %v347 = vld [vmem:[#allocation10] sm:$0x1]
        %v349 = vlaneseq
        %v350 = vshrl.u32 %v349, 7
        %v351 = vsub.s32 0, %v350
        %v352 = vrot.slane %v347, %v351
        %v354 = vadd.f32 %v345, %v352
        %v355 = vadd.f32 %v346, %v352
        %v356 = vmax.f32 %v354, 0.0
        %v357 = vmax.f32 %v355, 0.0
        %vm360 = vcmask 1040384
        %v361 = vrot.slane %v356, 7
        %v362 = vrot.slane %v357, 7
        %v363 = vsel %vm360, %v361, %v362
        %v366 = vsel %vm360, 0.0, %v361
        %vm367 = vcmask 1046528
        %v368 = vrot.slane %v356, 1
        %v369 = vrot.slane %v357, 1
        %v370 = vsel %vm367, %v368, %v369
        %v373 = vsel %vm367, %v369, 0.0
        %v374 = vpack.c.bf16 %v363, %v366
        %v375 = vpack.c.bf16 %v357, %v356
        %v376 = vpack.c.bf16 %v373, %v370
        %v377 = vld [vmem:[#allocation5] sm:$0xf]
        %v378 = vld [vmem:[#allocation5 + $0x4] sm:$0xf]
        %v379 = vld [vmem:[#allocation5 + $0x8] sm:$0xf]
        %v380 = vld [vmem:[#allocation5 + $0xc] sm:$0xf]
        %v381 = vld [vmem:[#allocation5 + $0x10] sm:$0xf]
        %v382 = vld [vmem:[#allocation5 + $0x14] sm:$0xf]
        %v383 = vld [vmem:[#allocation5 + $0x18] sm:$0xf]
        %v384 = vld [vmem:[#allocation5 + $0x1c] sm:$0xf]
        %v385 = vld [vmem:[#allocation5 + $0x20] sm:$0xf]
        %v386 = vld [vmem:[#allocation5 + $0x24] sm:$0xf]
        %v387 = vld [vmem:[#allocation5 + $0x28] sm:$0xf]
        %v388 = vld [vmem:[#allocation5 + $0x2c] sm:$0xf]
        %v389 = vld [vmem:[#allocation5 + $0x30] sm:$0xf]
        %v390 = vld [vmem:[#allocation5 + $0x34] sm:$0xf]
        %v391 = vld [vmem:[#allocation5 + $0x38] sm:$0xf]
        %v392 = vld [vmem:[#allocation5 + $0x3c] sm:$0xf]
        %v393 = vld [vmem:[#allocation5 + $0x40] sm:$0xf]
        %v394 = vld [vmem:[#allocation5 + $0x44] sm:$0xf]
        %v395 = vld [vmem:[#allocation5 + $0x48] sm:$0xf]
        %v396 = vld [vmem:[#allocation5 + $0x4c] sm:$0xf]
        %v397 = vld [vmem:[#allocation5 + $0x50] sm:$0xf]
        %v398 = vld [vmem:[#allocation5 + $0x54] sm:$0xf]
        %v399 = vld [vmem:[#allocation5 + $0x58] sm:$0xf]
        %v400 = vld [vmem:[#allocation5 + $0x5c] sm:$0xf]
        %v401 = vld [vmem:[#allocation5 + $0x60] sm:$0xf]
        %v402 = vld [vmem:[#allocation5 + $0x64] sm:$0xf]
        %v403 = vld [vmem:[#allocation5 + $0x68] sm:$0xf]
        %v404 = vld [vmem:[#allocation5 + $0x6c] sm:$0xf]
        %v405 = vld [vmem:[#allocation5 + $0x70] sm:$0xf]
        %v406 = vld [vmem:[#allocation5 + $0x74] sm:$0xf]
        %v407 = vld [vmem:[#allocation5 + $0x78] sm:$0xf]
        %v408 = vld [vmem:[#allocation5 + $0x7c] sm:$0xf]
        %v409 = vld [vmem:[#allocation5 + $0x80] sm:$0xf]
        %v410 = vld [vmem:[#allocation5 + $0x84] sm:$0xf]
        %v411 = vld [vmem:[#allocation5 + $0x88] sm:$0xf]
        %v412 = vld [vmem:[#allocation5 + $0x8c] sm:$0xf]
        %v413 = vld [vmem:[#allocation5 + $0x90] sm:$0xf]
        %v414 = vld [vmem:[#allocation5 + $0x94] sm:$0xf]
        %v415 = vld [vmem:[#allocation5 + $0x98] sm:$0xf]
        %v416 = vld [vmem:[#allocation5 + $0x9c] sm:$0xf]
        %v417 = vld [vmem:[#allocation5 + $0xa0] sm:$0xf]
        %v418 = vld [vmem:[#allocation5 + $0xa4] sm:$0xf]
        %v419 = vld [vmem:[#allocation5 + $0xa8] sm:$0xf]
        %v420 = vld [vmem:[#allocation5 + $0xac] sm:$0xf]
        %v421 = vld [vmem:[#allocation5 + $0xb0] sm:$0xf]
        %v422 = vld [vmem:[#allocation5 + $0xb4] sm:$0xf]
        %v423 = vld [vmem:[#allocation5 + $0xb8] sm:$0xf]
        %v424 = vld [vmem:[#allocation5 + $0xbc] sm:$0xf]
        %v425 = vld [vmem:[#allocation7] sm:$0x1]
        %v427 = vlaneseq
        %v428 = vshrl.u32 %v427, 7
        %v429 = vsub.s32 0, %v428
        %v430 = vrot.slane %v425, %v429
        %v480 = vunpack.c.l.b16 %v377
        %v481 = vunpack.c.l.b16 %v378
        %v482 = vunpack.c.l.b16 %v379
        %v483 = vunpack.c.l.b16 %v380
        %v484 = vunpack.c.l.b16 %v381
        %v485 = vunpack.c.l.b16 %v382
        %v486 = vunpack.c.l.b16 %v383
        %v487 = vunpack.c.l.b16 %v384
        %v488 = vunpack.c.l.b16 %v385
        %v489 = vunpack.c.l.b16 %v386
        %v490 = vunpack.c.l.b16 %v387
        %v491 = vunpack.c.l.b16 %v388
        %v492 = vunpack.c.l.b16 %v389
        %v493 = vunpack.c.l.b16 %v390
        %v494 = vunpack.c.l.b16 %v391
        %v495 = vunpack.c.l.b16 %v392
        %v496 = vunpack.c.l.b16 %v393
        %v497 = vunpack.c.l.b16 %v394
        %v498 = vunpack.c.l.b16 %v395
        %v499 = vunpack.c.l.b16 %v396
        %v500 = vunpack.c.l.b16 %v397
        %v501 = vunpack.c.l.b16 %v398
        %v502 = vunpack.c.l.b16 %v399
        %v503 = vunpack.c.l.b16 %v400
        %v504 = vunpack.c.l.b16 %v401
        %v505 = vunpack.c.l.b16 %v402
        %v506 = vunpack.c.l.b16 %v403
        %v507 = vunpack.c.l.b16 %v404
        %v508 = vunpack.c.l.b16 %v405
        %v509 = vunpack.c.l.b16 %v406
        %v510 = vunpack.c.l.b16 %v407
        %v511 = vunpack.c.l.b16 %v408
        %v512 = vunpack.c.l.b16 %v409
        %v513 = vunpack.c.l.b16 %v410
        %v514 = vunpack.c.l.b16 %v411
        %v515 = vunpack.c.l.b16 %v412
        %v516 = vunpack.c.l.b16 %v413
        %v517 = vunpack.c.l.b16 %v414
        %v518 = vunpack.c.l.b16 %v415
        %v519 = vunpack.c.l.b16 %v416
        %v520 = vunpack.c.l.b16 %v417
        %v521 = vunpack.c.l.b16 %v418
        %v522 = vunpack.c.l.b16 %v419
        %v523 = vunpack.c.l.b16 %v420
        %v524 = vunpack.c.l.b16 %v421
        %v525 = vunpack.c.l.b16 %v422
        %v526 = vunpack.c.l.b16 %v423
        %v527 = vunpack.c.l.b16 %v424
        %v528 = vpack.c.b16 %v481, %v480
        %v529 = vpack.c.b16 %v483, %v482
        %v530 = vpack.c.b16 %v485, %v484
        %v531 = vpack.c.b16 %v487, %v486
        %v532 = vpack.c.b16 %v489, %v488
        %v533 = vpack.c.b16 %v491, %v490
        %v534 = vpack.c.b16 %v493, %v492
        %v535 = vpack.c.b16 %v495, %v494
        %v536 = vpack.c.b16 %v497, %v496
        %v537 = vpack.c.b16 %v499, %v498
        %v538 = vpack.c.b16 %v501, %v500
        %v539 = vpack.c.b16 %v503, %v502
        %v540 = vpack.c.b16 %v505, %v504
        %v541 = vpack.c.b16 %v507, %v506
        %v542 = vpack.c.b16 %v509, %v508
        %v543 = vpack.c.b16 %v511, %v510
        %v544 = vpack.c.b16 %v513, %v512
        %v545 = vpack.c.b16 %v515, %v514
        %v546 = vpack.c.b16 %v517, %v516
        %v547 = vpack.c.b16 %v519, %v518
        %v548 = vpack.c.b16 %v521, %v520
        %v549 = vpack.c.b16 %v523, %v522
        %v550 = vpack.c.b16 %v525, %v524
        %v551 = vpack.c.b16 %v527, %v526
        %576 = vmatprep.subr.bf16.mxu0 0
        %577 = vmatpush1.bf16.msra.mxu0 %v528
        %578 = vmatprep.subr.bf16.mxu0 0
        %579 = vmatpush1.bf16.msra.mxu0 %v529
        %580 = vmatprep.subr.bf16.mxu0 0
        %581 = vmatpush1.bf16.msra.mxu0 %v530
        %582 = vmatprep.subr.bf16.mxu0 0
        %583 = vmatpush1.bf16.msra.mxu0 %v531
        %584 = vmatprep.subr.bf16.mxu0 0
        %585 = vmatpush1.bf16.msra.mxu0 %v532
        %586 = vmatprep.subr.bf16.mxu0 0
        %587 = vmatpush1.bf16.msra.mxu0 %v533
        %588 = vmatprep.subr.bf16.mxu0 0
        %589 = vmatpush1.bf16.msra.mxu0 %v534
        %590 = vmatprep.subr.bf16.mxu0 0
        %591 = vmatpush1.bf16.msra.mxu0 %v535
        %592 = vmatprep.subr.bf16.mxu0 0
        %593 = vmatpush1.bf16.msra.mxu0 %v536
        %594 = vmatprep.subr.bf16.mxu0 0
        %595 = vmatpush1.bf16.msra.mxu0 %v537
        %596 = vmatprep.subr.bf16.mxu0 0
        %597 = vmatpush1.bf16.msra.mxu0 %v538
        %598 = vmatprep.subr.bf16.mxu0 0
        %599 = vmatpush1.bf16.msra.mxu0 %v539
        %600 = vmatprep.subr.bf16.mxu0 0
        %601 = vmatpush1.bf16.msra.mxu0 %v540
        %602 = vmatprep.subr.bf16.mxu0 0
        %603 = vmatpush1.bf16.msra.mxu0 %v541
        %604 = vmatprep.subr.bf16.mxu0 0
        %605 = vmatpush1.bf16.msra.mxu0 %v542
        %606 = vmatprep.subr.bf16.mxu0 0
        %607 = vmatpush1.bf16.msra.mxu0 %v543
        %608 = vmatprep.mubr.bf16.mxu0 %v375
        %609 = vmatmul.mubr.bf16.gmra.mrb[0].mxu0 %v374
        %v610 = vpop.f32.mrb[0].mxu0
        %v611 = vadd.f32 %v430, %v610
        %v612 = vpop.f32.mrb[0].mxu0
        %v613 = vpop.f32.mrb[0].mxu0
        %v614 = vadd.f32 %v430, %v613
        %v615 = vpop.f32.mrb[0].mxu0
        %616 = vdwg.mxu0
        %617 = vmatprep.subr.bf16.mxu0 0
        %618 = vmatpush1.bf16.msra.mxu0 %v544
        %619 = vmatprep.subr.bf16.mxu0 0
        %620 = vmatpush1.bf16.msra.mxu0 %v545
        %621 = vmatprep.subr.bf16.mxu0 0
        %622 = vmatpush1.bf16.msra.mxu0 %v546
        %623 = vmatprep.subr.bf16.mxu0 0
        %624 = vmatpush1.bf16.msra.mxu0 %v547
        %625 = vmatprep.subr.bf16.mxu0 0
        %626 = vmatpush1.bf16.msra.mxu0 %v548
        %627 = vmatprep.subr.bf16.mxu0 0
        %628 = vmatpush1.bf16.msra.mxu0 %v549
        %629 = vmatprep.subr.bf16.mxu0 0
        %630 = vmatpush1.bf16.msra.mxu0 %v550
        %631 = vmatprep.subr.bf16.mxu0 0
        %632 = vmatpush1.bf16.msra.mxu0 %v551
        %633 = vmatprep.subr.bf16.mxu0 0
        %634 = vmatpush1.bf16.msra.mxu0 0
        %635 = vmatprep.subr.bf16.mxu0 0
        %636 = vmatpush1.bf16.msra.mxu0 0
        %637 = vmatprep.subr.bf16.mxu0 0
        %638 = vmatpush1.bf16.msra.mxu0 0
        %639 = vmatprep.subr.bf16.mxu0 0
        %640 = vmatpush1.bf16.msra.mxu0 0
        %641 = vmatprep.subr.bf16.mxu0 0
        %642 = vmatpush1.bf16.msra.mxu0 0
        %643 = vmatprep.subr.bf16.mxu0 0
        %644 = vmatpush1.bf16.msra.mxu0 0
        %645 = vmatprep.subr.bf16.mxu0 0
        %646 = vmatpush1.bf16.msra.mxu0 0
        %647 = vmatprep.subr.bf16.mxu0 0
        %648 = vmatpush1.bf16.msra.mxu0 0
        %649 = vmatprep.mubr.bf16.mxu0 0
        %650 = vmatmul.mubr.bf16.gmra.mrb[0].mxu0 %v376
        %v651 = vpop.f32.mrb[0].mxu0
        %v652 = vadd.f32 %v611, %v651
        %v653 = vpop.f32.mrb[0].mxu0
        %v654 = vpop.f32.mrb[0].mxu0
        %v655 = vadd.f32 %v614, %v654
        %v656 = vpop.f32.mrb[0].mxu0
        %657 = vdwg.mxu0
        %v658 = vpack.c.bf16 %v655, %v652
        %v660 = vunpack.c.l.b16 %v658
        %v661 = vunpack.c.h.b16 %v658
        %v662 = vpack.c.b16 %v660, %v660
        %v663 = vpack.c.b16 %v661, %v661
        %666 = vst [vmem:[%s325] sm:$0xf] %v662
        %667 = vst [vmem:[%s325 + $0x4] sm:$0xf] %v663
        %v668 = vadd.f32 %v652, %v655
        %v669 = vrot.slane %v668, 4
        %v670 = vadd.f32 %v668, %v669
        %v671 = vrot.slane %v670, 2
        %v672 = vadd.f32 %v670, %v671
        %v673 = vrot.slane %v672, 1
        %v674 = vadd.f32 %v672, %v673
        %v675 = vmul.f32 %v652, %v652
        %v676 = vmul.f32 %v655, %v655
        %v677 = vadd.f32 %v675, %v676
        %v678 = vrot.slane %v677, 4
        %v679 = vadd.f32 %v677, %v678
        %v680 = vrot.slane %v679, 2
        %v681 = vadd.f32 %v679, %v680
        %v682 = vrot.slane %v681, 1
        %v683 = vadd.f32 %v681, %v682
        %v684 = vsel %vm360, %v674, %v683
        %vm685 = vcmask 1041408
        %v686 = vsel %vm685, %v684, 0.0
        %687 = vst [vmem:[%s332] sm:$0xff] %v686
        %s688 = sand.u32 %s147, 1
        %s689 = scalar_lea.sflag [#allocation4], %s688
        %s690 = sand.u32 %s147, 1
        %s691 = smul.addr %s690, 8
        %s692 = scalar_lea.vmem [#allocation11], %s691
        %s693 = sand.u32 %s173, 1
        %s694 = scalar_lea.sflag [#allocation13], %s693
        %s695 = sand.u32 %s173, 1
        %s696 = smul.addr %s695, 8
        %s697 = scalar_lea.vmem [#allocation12], %s696
        // Predicated region
        $region61: #{down_forward.4} parent=39 // pred_check
          %p698 = pneg %p157
        $region62: #{down_forward.4} parent=39 // pred_check_branch
          %700 = sbr.rel (%p698) target = $region64
        $region63: #{down_forward.4} parent=39 // pred_region
          %s702 = ssub.s32 128, 128
          %703 = vsyncadd %s689, %s702
          %s704 = smul.addr %s29, 2
          %s705 = smul.addr %s704, 64
          %s706 = scalar_lea.hbm %s5, %s705
          %s707 = sshll.u32 %s692, 4
          %s708 = int_to_ptr.vmem [resolvable:$true] %s707
          %713 = dma.vmem_to_hbm [thread:$0]  %s708, 128, %s706, %s689, 64, 64, 4
        $region64: #{down_forward.4} parent=39 // pred_fallthru
          _
        // Predicated region
        $region65: #{down_forward.4} parent=39 // pred_check
          %p714 = pneg %p183
        $region66: #{down_forward.4} parent=39 // pred_check_branch
          %716 = sbr.rel (%p714) target = $region68
        $region67: #{down_forward.4} parent=39 // pred_region
          %s718 = ssub.s32 128, 128
          %719 = vsyncadd %s694, %s718
          %s720 = smul.addr %s29, 128
          %s721 = scalar_lea.hbm %s6, %s720
          %s723 = sshll.u32 %s697, 4
          %s724 = int_to_ptr.vmem [resolvable:$true] %s723
          %726 = dma.vmem_to_hbm [thread:$0]  %s724, 128, %s721, %s694
        $region68: #{down_forward.4} parent=39 // pred_fallthru
          _
      $region40: #{down_forward.4} parent=5 // pred_fallthru
        _
      %p727 = scmp.le.s32.totalorder 2, %s24
      // Predicated region
      $region69: #{down_forward.4} parent=5 // pred_check
        %p728 = pneg %p727
      $region70: #{down_forward.4} parent=5 // pred_check_branch
        %730 = sbr.rel (%p728) target = $region72
      $region71: #{down_forward.4} parent=5 // pred_region
        %s731 = ssub.s32 %s24, 2
        // Predicated region
        $region73: #{down_forward.4} parent=71 // pred_check
          %p732 = pneg %p163
        $region74: #{down_forward.4} parent=71 // pred_check_branch
          %734 = sbr.rel (%p732) target = $region76
        $region75: #{down_forward.4} parent=71 // pred_region
          %s735 = sand.u32 %s148, 1
          %s736 = scalar_lea.sflag [#allocation4], %s735
          %s737 = sand.u32 %s148, 1
          %s738 = smul.addr %s737, 8
          %s739 = scalar_lea.vmem [#allocation11], %s738
          %740 = dma.done %s736, 128
        $region76: #{down_forward.4} parent=71 // pred_fallthru
          _
        // Predicated region
        $region77: #{down_forward.4} parent=71 // pred_check
          %p741 = pneg %p189
        $region78: #{down_forward.4} parent=71 // pred_check_branch
          %743 = sbr.rel (%p741) target = $region80
        $region79: #{down_forward.4} parent=71 // pred_region
          %s744 = sand.u32 %s174, 1
          %s745 = scalar_lea.sflag [#allocation13], %s744
          %s746 = sand.u32 %s174, 1
          %s747 = smul.addr %s746, 8
          %s748 = scalar_lea.vmem [#allocation12], %s747
          %749 = dma.done %s745, 128
        $region80: #{down_forward.4} parent=71 // pred_fallthru
          _
      $region72: #{down_forward.4} parent=5 // pred_fallthru
        _
    $region6: #{down_forward.4} parent=1 // loop_footer
      %s28 = sadd.s32 1, %s24
    $region7: #{down_forward.4} parent=1 // loop_footer_branch
      %23 = sbr.rel target = $region3
    $region8: #{down_forward.4} parent=1 // loop_exit
      _
    %750 = vsyncpa [#allocation3], 1
    %s751 = scalar_lea.sflag [#allocation3], 1
    %752 = vsyncpa %s751, 1
    %753 = vsyncpa [#allocation6], 1
    %754 = vsyncpa [#allocation9], 1
    %755 = vsyncpa [#allocation4], 1
    %s756 = scalar_lea.sflag [#allocation4], 1
    %757 = vsyncpa %s756, 1
    %758 = vsyncpa [#allocation13], 1
    %s759 = scalar_lea.sflag [#allocation13], 1
    %760 = vsyncpa %s759, 1

// kernel: down_forward.5
$region0: #{down_forward.5}
  #allocation0 [shape = 'u32[]', space=smem, size = 0x4, offset = 0x4, fixed_abs, tag = 'smem constant byte address 0x4 - core index']
  #allocation1 [shape = 'u32[144,128]{1,0:T(1,128)}', space=vmem, size = 0x12000, scoped, tag = 'internal scratch']
  %s0 = inlined_call_operand.hbm [shape: bf16[2,16,128], index: 0, kind: input, shape index: {}]
  %s1 = inlined_call_operand.hbm [shape: f32[1,128], index: 1, kind: input, shape index: {}]
  %s2 = inlined_call_operand.hbm [shape: f32[1,128], index: 2, kind: input, shape index: {}]
  %s3 = inlined_call_operand.hbm [shape: bf16[2,128,64], index: 3, kind: input, shape index: {}]
  %s4 = inlined_call_operand.hbm [shape: f32[2,16,128], index: 4, kind: output, shape index: {0}]
  %s5 = inlined_call_operand.hbm [shape: f32[2,8,64], index: 5, kind: output, shape index: {1}]
  %6 = xla_tuple %s4, %s5
  %s7 = sld [smem:[#allocation0]]
  $region73: #{down_forward.5} parent=0
    _
  %s9 = ssub.s32 1, %s7
  %s10 = scalar_select 0, %s9, %s7
  $region1: #{down_forward.5} parent=0
    #allocation2 [shape = 'u8[8192]{0}', space=vmem, size = 0x2000, scoped, tag = 'input window, operand 0']
    #allocation3 [shape = 's32[2]{0}', space=sflag, size = 0x8, scoped, tag = 'scoped memory for down_forward.5']
    #allocation4 [shape = 's32[2]{0}', space=sflag, size = 0x8, scoped, tag = 'scoped memory for down_forward.5']
    #allocation5 [shape = 'u8[512]{0}', space=vmem, size = 0x400, scoped, tag = 'input window, operand 1, single buffered']
    #allocation6 [shape = 's32[1]{0}', space=sflag, size = 0x4, scoped, tag = 'scoped memory for down_forward.5']
    #allocation7 [shape = 'u8[512]{0}', space=vmem, size = 0x400, scoped, tag = 'input window, operand 2, single buffered']
    #allocation8 [shape = 'u8[65536]{0}', space=vmem, size = 0x10000, scoped, tag = 'input window, operand 3, single buffered']
    #allocation9 [shape = 's32[1]{0}', space=sflag, size = 0x4, scoped, tag = 'scoped memory for down_forward.5']
    #allocation10 [shape = 'u8[16384]{0}', space=vmem, size = 0x4000, scoped, tag = 'output window, operand 0']
    #allocation11 [shape = 'u8[8192]{0}', space=vmem, size = 0x2000, scoped, tag = 'output window, operand 1']
    #allocation12 [shape = 's32[2]{0}', space=sflag, size = 0x8, scoped, tag = 'scoped memory for down_forward.5']
    %11 = vsyncpa [#allocation3], 0
    %s12 = scalar_lea.sflag [#allocation3], 1
    %13 = vsyncpa %s12, 0
    %14 = vsyncpa [#allocation6], 0
    %15 = vsyncpa [#allocation9], 0
    %16 = vsyncpa [#allocation4], 0
    %s17 = scalar_lea.sflag [#allocation4], 1
    %18 = vsyncpa %s17, 0
    %19 = vsyncpa [#allocation12], 0
    %s20 = scalar_lea.sflag [#allocation12], 1
    %21 = vsyncpa %s20, 0
    loop: start=0, step=1, limit=4
    $region2: #{down_forward.5} parent=1 // loop_pre_header
      _
    $region3: #{down_forward.5} parent=1 // loop_header
      %s23 = sphi 0, %s27
      %p24 = scmp.ge.s32.totalorder %s23, 4
      %s33 = sphi 0, %s35
      %s36 = sphi 0, %s33
      %s37 = sphi 0, %s36
      %s53 = sphi 0, %s37
      %s57 = sphi 0, %s57
      %s59 = sphi 0, %s57
      %s60 = sphi 0, %s59
      %s74 = sphi 0, %s60
      %s78 = sphi 0, %s78
      %s80 = sphi 0, %s78
      %s81 = sphi 0, %s80
      %s95 = sphi 0, %s81
      %s99 = sphi 0, %s99
      %s101 = sphi 0, %s99
      %s102 = sphi 0, %s101
      %s116 = sphi 0, %s102
      %s122 = sphi 0, %s124
      %s125 = sphi 0, %s122
      %s126 = sphi 0, %s125
      %s142 = sphi 0, %s126
      %s148 = sphi 0, %s150
      %s151 = sphi 0, %s148
      %s152 = sphi 0, %s151
      %s168 = sphi 0, %s152
    $region4: #{down_forward.5} parent=1 // loop_header_branch
      %26 = sbr.rel (%p24) target = $region8
    $region5: #{down_forward.5} parent=1 // loop_body
      %s28 = ssub.s32 %s23, 1
      %s29 = ssub.s32 %s23, 2
      %s30 = sadd.s32 %s23, 1
      %s31 = ssub.s32 %s23, %s30
      %p32 = scmp.eq.s32.totalorder %s31, 0
      %s34 = sadd.s32 %s33, 1
      %s35 = scalar_select %p32, %s33, %s34
      %p38 = pneg %p32
      %p39 = scmp.eq.s32.totalorder %s23, 1
      %p40 = por %p38, %p39
      %p41 = scmp.ne.s32.totalorder %s33, %s36
      %p42 = scmp.eq.s32.totalorder %s23, 0
      %p43 = por %p41, %p42
      %p44 = scmp.ne.s32.totalorder %s33, %s36
      %p45 = scmp.eq.s32.totalorder %s28, 1
      %p46 = por %p44, %p45
      %p47 = scmp.ne.s32.totalorder %s36, %s37
      %p48 = scmp.eq.s32.totalorder %s28, 0
      %p49 = por %p47, %p48
      %p50 = scmp.ne.s32.totalorder %s36, %s37
      %p51 = scmp.eq.s32.totalorder %s29, 1
      %p52 = por %p50, %p51
      %p54 = scmp.ne.s32.totalorder %s37, %s53
      %p55 = scmp.eq.s32.totalorder %s29, 0
      %p56 = por %p54, %p55
      %s58 = sadd.s32 %s57, 1
      %p61 = scmp.eq.s32.totalorder %s23, 1
      %p62 = scmp.ne.s32.totalorder %s57, %s59
      %p63 = scmp.eq.s32.totalorder %s23, 0
      %p64 = por %p62, %p63
      %p65 = scmp.ne.s32.totalorder %s57, %s59
      %p66 = scmp.eq.s32.totalorder %s28, 1
      %p67 = por %p65, %p66
      %p68 = scmp.ne.s32.totalorder %s59, %s60
      %p69 = scmp.eq.s32.totalorder %s28, 0
      %p70 = por %p68, %p69
      %p71 = scmp.ne.s32.totalorder %s59, %s60
      %p72 = scmp.eq.s32.totalorder %s29, 1
      %p73 = por %p71, %p72
      %p75 = scmp.ne.s32.totalorder %s60, %s74
      %p76 = scmp.eq.s32.totalorder %s29, 0
      %p77 = por %p75, %p76
      %s79 = sadd.s32 %s78, 1
      %p82 = scmp.eq.s32.totalorder %s23, 1
      %p83 = scmp.ne.s32.totalorder %s78, %s80
      %p84 = scmp.eq.s32.totalorder %s23, 0
      %p85 = por %p83, %p84
      %p86 = scmp.ne.s32.totalorder %s78, %s80
      %p87 = scmp.eq.s32.totalorder %s28, 1
      %p88 = por %p86, %p87
      %p89 = scmp.ne.s32.totalorder %s80, %s81
      %p90 = scmp.eq.s32.totalorder %s28, 0
      %p91 = por %p89, %p90
      %p92 = scmp.ne.s32.totalorder %s80, %s81
      %p93 = scmp.eq.s32.totalorder %s29, 1
      %p94 = por %p92, %p93
      %p96 = scmp.ne.s32.totalorder %s81, %s95
      %p97 = scmp.eq.s32.totalorder %s29, 0
      %p98 = por %p96, %p97
      %s100 = sadd.s32 %s99, 1
      %p103 = scmp.eq.s32.totalorder %s23, 1
      %p104 = scmp.ne.s32.totalorder %s99, %s101
      %p105 = scmp.eq.s32.totalorder %s23, 0
      %p106 = por %p104, %p105
      %p107 = scmp.ne.s32.totalorder %s99, %s101
      %p108 = scmp.eq.s32.totalorder %s28, 1
      %p109 = por %p107, %p108
      %p110 = scmp.ne.s32.totalorder %s101, %s102
      %p111 = scmp.eq.s32.totalorder %s28, 0
      %p112 = por %p110, %p111
      %p113 = scmp.ne.s32.totalorder %s101, %s102
      %p114 = scmp.eq.s32.totalorder %s29, 1
      %p115 = por %p113, %p114
      %p117 = scmp.ne.s32.totalorder %s102, %s116
      %p118 = scmp.eq.s32.totalorder %s29, 0
      %p119 = por %p117, %p118
      %s120 = ssub.s32 %s23, %s30
      %p121 = scmp.eq.s32.totalorder %s120, 0
      %s123 = sadd.s32 %s122, 1
      %s124 = scalar_select %p121, %s122, %s123
      %p127 = pneg %p121
      %p128 = scmp.eq.s32.totalorder %s23, 1
      %p129 = por %p127, %p128
      %p130 = scmp.ne.s32.totalorder %s122, %s125
      %p131 = scmp.eq.s32.totalorder %s23, 0
      %p132 = por %p130, %p131
      %p133 = scmp.ne.s32.totalorder %s122, %s125
      %p134 = scmp.eq.s32.totalorder %s28, 1
      %p135 = por %p133, %p134
      %p136 = scmp.ne.s32.totalorder %s125, %s126
      %p137 = scmp.eq.s32.totalorder %s28, 0
      %p138 = por %p136, %p137
      %p139 = scmp.ne.s32.totalorder %s125, %s126
      %p140 = scmp.eq.s32.totalorder %s29, 1
      %p141 = por %p139, %p140
      %p143 = scmp.ne.s32.totalorder %s126, %s142
      %p144 = scmp.eq.s32.totalorder %s29, 0
      %p145 = por %p143, %p144
      %s146 = ssub.s32 %s23, %s30
      %p147 = scmp.eq.s32.totalorder %s146, 0
      %s149 = sadd.s32 %s148, 1
      %s150 = scalar_select %p147, %s148, %s149
      %p153 = pneg %p147
      %p154 = scmp.eq.s32.totalorder %s23, 1
      %p155 = por %p153, %p154
      %p156 = scmp.ne.s32.totalorder %s148, %s151
      %p157 = scmp.eq.s32.totalorder %s23, 0
      %p158 = por %p156, %p157
      %p159 = scmp.ne.s32.totalorder %s148, %s151
      %p160 = scmp.eq.s32.totalorder %s28, 1
      %p161 = por %p159, %p160
      %p162 = scmp.ne.s32.totalorder %s151, %s152
      %p163 = scmp.eq.s32.totalorder %s28, 0
      %p164 = por %p162, %p163
      %p165 = scmp.ne.s32.totalorder %s151, %s152
      %p166 = scmp.eq.s32.totalorder %s29, 1
      %p167 = por %p165, %p166
      %p169 = scmp.ne.s32.totalorder %s152, %s168
      %p170 = scmp.eq.s32.totalorder %s29, 0
      %p171 = por %p169, %p170
      %p172 = scmp.le.s32.totalorder 1, %s23
      %p173 = scmp.lt.s32.totalorder %s23, 3
      %p174 = pnand %p172, %p173
      %p175 = pneg %p174
      // Predicated region
      $region9: #{down_forward.5} parent=5 // pred_check
        _
      $region10: #{down_forward.5} parent=5 // pred_check_branch
        %177 = sbr.rel (%p174) target = $region12
      $region11: #{down_forward.5} parent=5 // pred_region
        %s178 = ssub.s32 %s23, 1
        // Predicated region
        $region13: #{down_forward.5} parent=11 // pred_check
          %p179 = pneg %p70
        $region14: #{down_forward.5} parent=11 // pred_check_branch
          %181 = sbr.rel (%p179) target = $region16
        $region15: #{down_forward.5} parent=11 // pred_region
          %s183 = ssub.s32 16, 16
          %184 = vsyncadd [#allocation6], %s183
          %s186 = sshll.u32 [#allocation5], 4
          %s187 = int_to_ptr.vmem [resolvable:$true] %s186
          %189 = dma.hbm_to_vmem [thread:$0]  %s1, 16, %s187, [#allocation6]
        $region16: #{down_forward.5} parent=11 // pred_fallthru
          _
        // Predicated region
        $region17: #{down_forward.5} parent=11 // pred_check
          %p190 = pneg %p91
        $region18: #{down_forward.5} parent=11 // pred_check_branch
          %192 = sbr.rel (%p190) target = $region20
        $region19: #{down_forward.5} parent=11 // pred_region
          %s194 = ssub.s32 16, 16
          %195 = vsyncadd [#allocation6], %s194
          %s197 = sshll.u32 [#allocation7], 4
          %s198 = int_to_ptr.vmem [resolvable:$true] %s197
          %200 = dma.hbm_to_vmem [thread:$0]  %s2, 16, %s198, [#allocation6]
        $region20: #{down_forward.5} parent=11 // pred_fallthru
          _
        // Predicated region
        $region21: #{down_forward.5} parent=11 // pred_check
          %p201 = pneg %p112
        $region22: #{down_forward.5} parent=11 // pred_check_branch
          %203 = sbr.rel (%p201) target = $region24
        $region23: #{down_forward.5} parent=11 // pred_region
          %s205 = ssub.s32 2048, 2048
          %206 = vsyncadd [#allocation9], %s205
          %s207 = sshll.u32 [#allocation8], 4
          %s208 = int_to_ptr.vmem [resolvable:$true] %s207
          %213 = dma.hbm_to_vmem [thread:$0]  %s3, 2048, %s208, [#allocation9], 64, 64, 4
        $region24: #{down_forward.5} parent=11 // pred_fallthru
          _
      $region12: #{down_forward.5} parent=5 // pred_fallthru
        _
      %p214 = scmp.lt.s32.totalorder %s23, 2
      // Predicated region
      $region25: #{down_forward.5} parent=5 // pred_check
        %p215 = pneg %p214
      $region26: #{down_forward.5} parent=5 // pred_check_branch
        %217 = sbr.rel (%p215) target = $region28
      $region27: #{down_forward.5} parent=5 // pred_region
        // Predicated region
        $region29: #{down_forward.5} parent=27 // pred_check
          %p218 = pneg %p43
        $region30: #{down_forward.5} parent=27 // pred_check_branch
          %220 = sbr.rel (%p218) target = $region32
        $region31: #{down_forward.5} parent=27 // pred_region
          %s221 = sand.u32 %s33, 1
          %s222 = scalar_lea.sflag [#allocation3], %s221
          %s223 = sand.u32 %s33, 1
          %s224 = smul.addr %s223, 8
          %s225 = scalar_lea.vmem [#allocation2], %s224
          %s227 = ssub.s32 128, 128
          %228 = vsyncadd %s222, %s227
          %s229 = smul.addr %s23, 2
          %s230 = smul.addr %s229, 64
          %s231 = scalar_lea.hbm %s0, %s230
          %s232 = sshll.u32 %s225, 4
          %s233 = int_to_ptr.vmem [resolvable:$true] %s232
          %238 = dma.hbm_to_vmem [thread:$0]  %s231, 128, %s233, %s222, 64, 64, 4
        $region32: #{down_forward.5} parent=27 // pred_fallthru
          _
      $region28: #{down_forward.5} parent=5 // pred_fallthru
        _
      %p239 = scmp.le.s32.totalorder 1, %s23
      %p240 = scmp.lt.s32.totalorder %s23, 3
      %p241 = pnand %p239, %p240
      %p242 = pneg %p241
      // Predicated region
      $region33: #{down_forward.5} parent=5 // pred_check
        _
      $region34: #{down_forward.5} parent=5 // pred_check_branch
        %244 = sbr.rel (%p241) target = $region36
      $region35: #{down_forward.5} parent=5 // pred_region
        %s245 = ssub.s32 %s23, 1
        %s246 = sand.u32 %s36, 1
        %s247 = scalar_lea.sflag [#allocation3], %s246
        %s248 = sand.u32 %s36, 1
        %s249 = smul.addr %s248, 8
        %s250 = scalar_lea.vmem [#allocation2], %s249
        // Predicated region
        $region37: #{down_forward.5} parent=35 // pred_check
          %p251 = pneg %p49
        $region38: #{down_forward.5} parent=35 // pred_check_branch
          %253 = sbr.rel (%p251) target = $region40
        $region39: #{down_forward.5} parent=35 // pred_region
          %254 = dma.done %s247, 128
        $region40: #{down_forward.5} parent=35 // pred_fallthru
          _
        // Predicated region
        $region41: #{down_forward.5} parent=35 // pred_check
          %p255 = pneg %p70
        $region42: #{down_forward.5} parent=35 // pred_check_branch
          %257 = sbr.rel (%p255) target = $region44
        $region43: #{down_forward.5} parent=35 // pred_region
          %258 = dma.done [#allocation6], 16
        $region44: #{down_forward.5} parent=35 // pred_fallthru
          _
        // Predicated region
        $region45: #{down_forward.5} parent=35 // pred_check
          %p259 = pneg %p91
        $region46: #{down_forward.5} parent=35 // pred_check_branch
          %261 = sbr.rel (%p259) target = $region48
        $region47: #{down_forward.5} parent=35 // pred_region
          %262 = dma.done [#allocation6], 16
        $region48: #{down_forward.5} parent=35 // pred_fallthru
          _
        // Predicated region
        $region49: #{down_forward.5} parent=35 // pred_check
          %p263 = pneg %p112
        $region50: #{down_forward.5} parent=35 // pred_check_branch
          %265 = sbr.rel (%p263) target = $region52
        $region51: #{down_forward.5} parent=35 // pred_region
          %266 = dma.done [#allocation9], 2048
        $region52: #{down_forward.5} parent=35 // pred_fallthru
          _
        %s267 = sand.u32 %s36, 1
        %s268 = scalar_lea.sflag [#allocation3], %s267
        %s269 = sand.u32 %s36, 1
        %s270 = smul.addr %s269, 8
        %s271 = scalar_lea.vmem [#allocation2], %s270
        %p272 = pneg %p49
        %p273 = pneg %p46
        %p274 = pneg %p70
        %p275 = pneg %p67
        %p276 = pneg %p91
        %p277 = pneg %p88
        %p278 = pneg %p112
        %p279 = pneg %p109
        %p280 = pneg %p138
        %p281 = pneg %p135
        %s282 = sand.u32 %s125, 1
        %s283 = scalar_lea.sflag [#allocation4], %s282
        %s284 = sand.u32 %s125, 1
        %s285 = smul.addr %s284, 16
        %s286 = scalar_lea.vmem [#allocation10], %s285
        %p287 = pneg %p164
        %p288 = pneg %p161
        %s289 = sand.u32 %s151, 1
        %s290 = scalar_lea.sflag [#allocation12], %s289
        %s291 = sand.u32 %s151, 1
        %s292 = smul.addr %s291, 8
        %s293 = scalar_lea.vmem [#allocation11], %s292
        %v295 = vld [vmem:[%s250] sm:$0xf]
        %v296 = vld [vmem:[%s250 + $0x4] sm:$0xf]
        %v297 = vunpack.c.l.bf16 %v295
        %v298 = vunpack.c.l.bf16 %v296
        %v299 = vld [vmem:[#allocation5] sm:$0x1]
        %v301 = vlaneseq
        %v302 = vshrl.u32 %v301, 7
        %v303 = vsub.s32 0, %v302
        %v304 = vrot.slane %v299, %v303
        %v306 = vmul.f32 %v297, %v304
        %v307 = vmul.f32 %v298, %v304
        %v308 = vld [vmem:[#allocation7] sm:$0x1]
        %v310 = vlaneseq
        %v311 = vshrl.u32 %v310, 7
        %v312 = vsub.s32 0, %v311
        %v313 = vrot.slane %v308, %v312
        %v315 = vadd.f32 %v306, %v313
        %v316 = vadd.f32 %v307, %v313
        %v317 = vmax.f32 %v315, 0.0
        %v318 = vmax.f32 %v316, 0.0
        %319 = vst [vmem:[%s286] sm:$0xff] %v317
        %320 = vst [vmem:[%s286 + $0x8] sm:$0xff] %v318
        %v322 = vrot.slane %v317, 1
        %v324 = vrot.slane %v317, 2
        %v326 = vrot.slane %v317, 3
        %v329 = vrot.slane %v318, 4
        %v331 = vrot.slane %v318, 5
        %v333 = vrot.slane %v318, 6
        %v335 = vrot.slane %v318, 7
        %vm337 = vcmask 1040384
        %v338 = vsel %vm337, %v317, %v322
        %vm339 = vcmask 1041408
        %v340 = vsel %vm339, %v338, %v324
        %vm341 = vcmask 1042432
        %v342 = vsel %vm341, %v340, %v326
        %vm343 = vcmask 1043456
        %v344 = vsel %vm343, %v342, %v329
        %vm345 = vcmask 1044480
        %v346 = vsel %vm345, %v344, %v331
        %vm347 = vcmask 1045504
        %v348 = vsel %vm347, %v346, %v333
        %vm349 = vcmask 1046528
        %v350 = vsel %vm349, %v348, %v335
        %v351 = vrot.slane %v317, 4
        %v353 = vsel %vm337, %v322, %v324
        %v354 = vsel %vm339, %v353, %v326
        %v355 = vsel %vm341, %v354, %v351
        %v356 = vsel %vm343, %v355, %v331
        %v357 = vsel %vm345, %v356, %v333
        %v358 = vsel %vm347, %v357, %v335
        %v359 = vsel %vm349, %v358, %v318
        %v360 = vmax.f32 %v350, %v359
        %v361 = vpack.c.bf16 %v360, %v360
        %v362 = vld [vmem:[#allocation8] sm:$0xf]
        %v363 = vld [vmem:[#allocation8 + $0x4] sm:$0xf]
        %v364 = vld [vmem:[#allocation8 + $0x8] sm:$0xf]
        %v365 = vld [vmem:[#allocation8 + $0xc] sm:$0xf]
        %v366 = vld [vmem:[#allocation8 + $0x10] sm:$0xf]
        %v367 = vld [vmem:[#allocation8 + $0x14] sm:$0xf]
        %v368 = vld [vmem:[#allocation8 + $0x18] sm:$0xf]
        %v369 = vld [vmem:[#allocation8 + $0x1c] sm:$0xf]
        %v370 = vld [vmem:[#allocation8 + $0x20] sm:$0xf]
        %v371 = vld [vmem:[#allocation8 + $0x24] sm:$0xf]
        %v372 = vld [vmem:[#allocation8 + $0x28] sm:$0xf]
        %v373 = vld [vmem:[#allocation8 + $0x2c] sm:$0xf]
        %v374 = vld [vmem:[#allocation8 + $0x30] sm:$0xf]
        %v375 = vld [vmem:[#allocation8 + $0x34] sm:$0xf]
        %v376 = vld [vmem:[#allocation8 + $0x38] sm:$0xf]
        %v377 = vld [vmem:[#allocation8 + $0x3c] sm:$0xf]
        %v394 = vunpack.c.l.b16 %v362
        %v395 = vunpack.c.l.b16 %v363
        %v396 = vunpack.c.l.b16 %v364
        %v397 = vunpack.c.l.b16 %v365
        %v398 = vunpack.c.l.b16 %v366
        %v399 = vunpack.c.l.b16 %v367
        %v400 = vunpack.c.l.b16 %v368
        %v401 = vunpack.c.l.b16 %v369
        %v402 = vunpack.c.l.b16 %v370
        %v403 = vunpack.c.l.b16 %v371
        %v404 = vunpack.c.l.b16 %v372
        %v405 = vunpack.c.l.b16 %v373
        %v406 = vunpack.c.l.b16 %v374
        %v407 = vunpack.c.l.b16 %v375
        %v408 = vunpack.c.l.b16 %v376
        %v409 = vunpack.c.l.b16 %v377
        %v410 = vpack.c.b16 %v395, %v394
        %v411 = vpack.c.b16 %v397, %v396
        %v412 = vpack.c.b16 %v399, %v398
        %v413 = vpack.c.b16 %v401, %v400
        %v414 = vpack.c.b16 %v403, %v402
        %v415 = vpack.c.b16 %v405, %v404
        %v416 = vpack.c.b16 %v407, %v406
        %v417 = vpack.c.b16 %v409, %v408
        %426 = vmatprep.subr.bf16.mxu0 0
        %427 = vmatpush1.bf16.msra.mxu0 %v410
        %428 = vmatprep.subr.bf16.mxu0 0
        %429 = vmatpush1.bf16.msra.mxu0 %v411
        %430 = vmatprep.subr.bf16.mxu0 0
        %431 = vmatpush1.bf16.msra.mxu0 %v412
        %432 = vmatprep.subr.bf16.mxu0 0
        %433 = vmatpush1.bf16.msra.mxu0 %v413
        %434 = vmatprep.subr.bf16.mxu0 0
        %435 = vmatpush1.bf16.msra.mxu0 %v414
        %436 = vmatprep.subr.bf16.mxu0 0
        %437 = vmatpush1.bf16.msra.mxu0 %v415
        %438 = vmatprep.subr.bf16.mxu0 0
        %439 = vmatpush1.bf16.msra.mxu0 %v416
        %440 = vmatprep.subr.bf16.mxu0 0
        %441 = vmatpush1.bf16.msra.mxu0 %v417
        %442 = vmatprep.subr.bf16.mxu0 0
        %443 = vmatpush1.bf16.msra.mxu0 0
        %444 = vmatprep.subr.bf16.mxu0 0
        %445 = vmatpush1.bf16.msra.mxu0 0
        %446 = vmatprep.subr.bf16.mxu0 0
        %447 = vmatpush1.bf16.msra.mxu0 0
        %448 = vmatprep.subr.bf16.mxu0 0
        %449 = vmatpush1.bf16.msra.mxu0 0
        %450 = vmatprep.subr.bf16.mxu0 0
        %451 = vmatpush1.bf16.msra.mxu0 0
        %452 = vmatprep.subr.bf16.mxu0 0
        %453 = vmatpush1.bf16.msra.mxu0 0
        %454 = vmatprep.subr.bf16.mxu0 0
        %455 = vmatpush1.bf16.msra.mxu0 0
        %456 = vmatprep.subr.bf16.mxu0 0
        %457 = vmatpush1.bf16.msra.mxu0 0
        %458 = vmatprep.mubr.bf16.mxu0 0
        %459 = vmatmul.mubr.bf16.gmra.mrb[0].mxu0 %v361
        %v460 = vpop.f32.mrb[0].mxu0
        %v461 = vadd.f32 0.0, %v460
        %v462 = vpop.f32.mrb[0].mxu0
        %v463 = vpop.f32.mrb[0].mxu0
        %v464 = vpop.f32.mrb[0].mxu0
        %465 = vdwg.mxu0
        %s466 = scalar_lea.vmem [#allocation8], 64
        %v467 = vld [vmem:[%s466] sm:$0xf]
        %v468 = vld [vmem:[%s466 + $0x4] sm:$0xf]
        %v469 = vld [vmem:[%s466 + $0x8] sm:$0xf]
        %v470 = vld [vmem:[%s466 + $0xc] sm:$0xf]
        %v471 = vld [vmem:[%s466 + $0x10] sm:$0xf]
        %v472 = vld [vmem:[%s466 + $0x14] sm:$0xf]
        %v473 = vld [vmem:[%s466 + $0x18] sm:$0xf]
        %v474 = vld [vmem:[%s466 + $0x1c] sm:$0xf]
        %v475 = vld [vmem:[%s466 + $0x20] sm:$0xf]
        %v476 = vld [vmem:[%s466 + $0x24] sm:$0xf]
        %v477 = vld [vmem:[%s466 + $0x28] sm:$0xf]
        %v478 = vld [vmem:[%s466 + $0x2c] sm:$0xf]
        %v479 = vld [vmem:[%s466 + $0x30] sm:$0xf]
        %v480 = vld [vmem:[%s466 + $0x34] sm:$0xf]
        %v481 = vld [vmem:[%s466 + $0x38] sm:$0xf]
        %v482 = vld [vmem:[%s466 + $0x3c] sm:$0xf]
        %v499 = vunpack.c.l.b16 %v467
        %v500 = vunpack.c.l.b16 %v468
        %v501 = vunpack.c.l.b16 %v469
        %v502 = vunpack.c.l.b16 %v470
        %v503 = vunpack.c.l.b16 %v471
        %v504 = vunpack.c.l.b16 %v472
        %v505 = vunpack.c.l.b16 %v473
        %v506 = vunpack.c.l.b16 %v474
        %v507 = vunpack.c.l.b16 %v475
        %v508 = vunpack.c.l.b16 %v476
        %v509 = vunpack.c.l.b16 %v477
        %v510 = vunpack.c.l.b16 %v478
        %v511 = vunpack.c.l.b16 %v479
        %v512 = vunpack.c.l.b16 %v480
        %v513 = vunpack.c.l.b16 %v481
        %v514 = vunpack.c.l.b16 %v482
        %v515 = vpack.c.b16 %v500, %v499
        %v516 = vpack.c.b16 %v502, %v501
        %v517 = vpack.c.b16 %v504, %v503
        %v518 = vpack.c.b16 %v506, %v505
        %v519 = vpack.c.b16 %v508, %v507
        %v520 = vpack.c.b16 %v510, %v509
        %v521 = vpack.c.b16 %v512, %v511
        %v522 = vpack.c.b16 %v514, %v513
        %531 = vmatprep.subr.bf16.mxu0 0
        %532 = vmatpush1.bf16.msra.mxu0 %v515
        %533 = vmatprep.subr.bf16.mxu0 0
        %534 = vmatpush1.bf16.msra.mxu0 %v516
        %535 = vmatprep.subr.bf16.mxu0 0
        %536 = vmatpush1.bf16.msra.mxu0 %v517
        %537 = vmatprep.subr.bf16.mxu0 0
        %538 = vmatpush1.bf16.msra.mxu0 %v518
        %539 = vmatprep.subr.bf16.mxu0 0
        %540 = vmatpush1.bf16.msra.mxu0 %v519
        %541 = vmatprep.subr.bf16.mxu0 0
        %542 = vmatpush1.bf16.msra.mxu0 %v520
        %543 = vmatprep.subr.bf16.mxu0 0
        %544 = vmatpush1.bf16.msra.mxu0 %v521
        %545 = vmatprep.subr.bf16.mxu0 0
        %546 = vmatpush1.bf16.msra.mxu0 %v522
        %547 = vmatprep.subr.bf16.mxu0 0
        %548 = vmatpush1.bf16.msra.mxu0 0
        %549 = vmatprep.subr.bf16.mxu0 0
        %550 = vmatpush1.bf16.msra.mxu0 0
        %551 = vmatprep.subr.bf16.mxu0 0
        %552 = vmatpush1.bf16.msra.mxu0 0
        %553 = vmatprep.subr.bf16.mxu0 0
        %554 = vmatpush1.bf16.msra.mxu0 0
        %555 = vmatprep.subr.bf16.mxu0 0
        %556 = vmatpush1.bf16.msra.mxu0 0
        %557 = vmatprep.subr.bf16.mxu0 0
        %558 = vmatpush1.bf16.msra.mxu0 0
        %559 = vmatprep.subr.bf16.mxu0 0
        %560 = vmatpush1.bf16.msra.mxu0 0
        %561 = vmatprep.subr.bf16.mxu0 0
        %562 = vmatpush1.bf16.msra.mxu0 0
        %563 = vmatprep.mubr.bf16.mxu0 0
        %564 = vmatmul.mubr.bf16.gmra.mrb[0].mxu0 %v361
        %v565 = vpop.f32.mrb[0].mxu0
        %v566 = vadd.f32 0.0, %v565
        %v567 = vpop.f32.mrb[0].mxu0
        %v568 = vpop.f32.mrb[0].mxu0
        %v569 = vpop.f32.mrb[0].mxu0
        %570 = vdwg.mxu0
        %v571 = vmax.f32 %v461, %v566
        %vm572 = vcmask 523264
        %573 = vst.msk [vmem:[%s293] sm:$0xff] %vm572, %v571
        %s574 = sand.u32 %s125, 1
        %s575 = scalar_lea.sflag [#allocation4], %s574
        %s576 = sand.u32 %s125, 1
        %s577 = smul.addr %s576, 16
        %s578 = scalar_lea.vmem [#allocation10], %s577
        %s579 = sand.u32 %s151, 1
        %s580 = scalar_lea.sflag [#allocation12], %s579
        %s581 = sand.u32 %s151, 1
        %s582 = smul.addr %s581, 8
        %s583 = scalar_lea.vmem [#allocation11], %s582
        // Predicated region
        $region53: #{down_forward.5} parent=35 // pred_check
          %p584 = pneg %p135
        $region54: #{down_forward.5} parent=35 // pred_check_branch
          %586 = sbr.rel (%p584) target = $region56
        $region55: #{down_forward.5} parent=35 // pred_region
          %s588 = ssub.s32 256, 256
          %589 = vsyncadd %s575, %s588
          %s590 = smul.addr %s28, 2
          %s591 = smul.addr %s590, 128
          %s592 = scalar_lea.hbm %s4, %s591
          %s593 = sshll.u32 %s578, 4
          %s594 = int_to_ptr.vmem [resolvable:$true] %s593
          %599 = dma.vmem_to_hbm [thread:$0]  %s594, 256, %s592, %s575, 128, 128, 8
        $region56: #{down_forward.5} parent=35 // pred_fallthru
          _
        // Predicated region
        $region57: #{down_forward.5} parent=35 // pred_check
          %p600 = pneg %p161
        $region58: #{down_forward.5} parent=35 // pred_check_branch
          %602 = sbr.rel (%p600) target = $region60
        $region59: #{down_forward.5} parent=35 // pred_region
          %s604 = ssub.s32 128, 128
          %605 = vsyncadd %s580, %s604
          %s606 = smul.addr %s28, 128
          %s607 = scalar_lea.hbm %s5, %s606
          %s609 = sshll.u32 %s583, 4
          %s610 = int_to_ptr.vmem [resolvable:$true] %s609
          %612 = dma.vmem_to_hbm [thread:$0]  %s610, 128, %s607, %s580
        $region60: #{down_forward.5} parent=35 // pred_fallthru
          _
      $region36: #{down_forward.5} parent=5 // pred_fallthru
        _
      %p613 = scmp.le.s32.totalorder 2, %s23
      // Predicated region
      $region61: #{down_forward.5} parent=5 // pred_check
        %p614 = pneg %p613
      $region62: #{down_forward.5} parent=5 // pred_check_branch
        %616 = sbr.rel (%p614) target = $region64
      $region63: #{down_forward.5} parent=5 // pred_region
        %s617 = ssub.s32 %s23, 2
        // Predicated region
        $region65: #{down_forward.5} parent=63 // pred_check
          %p618 = pneg %p141
        $region66: #{down_forward.5} parent=63 // pred_check_branch
          %620 = sbr.rel (%p618) target = $region68
        $region67: #{down_forward.5} parent=63 // pred_region
          %s621 = sand.u32 %s126, 1
          %s622 = scalar_lea.sflag [#allocation4], %s621
          %s623 = sand.u32 %s126, 1
          %s624 = smul.addr %s623, 16
          %s625 = scalar_lea.vmem [#allocation10], %s624
          %626 = dma.done %s622, 256
        $region68: #{down_forward.5} parent=63 // pred_fallthru
          _
        // Predicated region
        $region69: #{down_forward.5} parent=63 // pred_check
          %p627 = pneg %p167
        $region70: #{down_forward.5} parent=63 // pred_check_branch
          %629 = sbr.rel (%p627) target = $region72
        $region71: #{down_forward.5} parent=63 // pred_region
          %s630 = sand.u32 %s152, 1
          %s631 = scalar_lea.sflag [#allocation12], %s630
          %s632 = sand.u32 %s152, 1
          %s633 = smul.addr %s632, 8
          %s634 = scalar_lea.vmem [#allocation11], %s633
          %635 = dma.done %s631, 128
        $region72: #{down_forward.5} parent=63 // pred_fallthru
          _
      $region64: #{down_forward.5} parent=5 // pred_fallthru
        _
    $region6: #{down_forward.5} parent=1 // loop_footer
      %s27 = sadd.s32 1, %s23
    $region7: #{down_forward.5} parent=1 // loop_footer_branch
      %22 = sbr.rel target = $region3
    $region8: #{down_forward.5} parent=1 // loop_exit
      _
    %636 = vsyncpa [#allocation3], 1
    %s637 = scalar_lea.sflag [#allocation3], 1
    %638 = vsyncpa %s637, 1
    %639 = vsyncpa [#allocation6], 1
    %640 = vsyncpa [#allocation9], 1
    %641 = vsyncpa [#allocation4], 1
    %s642 = scalar_lea.sflag [#allocation4], 1
    %643 = vsyncpa %s642, 1
    %644 = vsyncpa [#allocation12], 1
    %s645 = scalar_lea.sflag [#allocation12], 1
    %646 = vsyncpa %s645, 1

</llo_original>
